<compile_context>
chip_gen: v5e
topology: v5e:2x2
jax: 0.10.0
libtpu: 0.0.40
codegen_flags: <defaults>
</compile_context>

<pallas_src>
import functools
import math

import jax
import jax.numpy as jnp
from jax import lax
from jax.experimental import pallas as pl
from jax.experimental.pallas import tpu as pltpu


# ----------------------------------------------------------------------------
# Shared math helpers (used by both the Pallas kernels and the pure-JAX
# reference path so the correctness check compares identical formulas).
# ----------------------------------------------------------------------------

_GELU_C = math.sqrt(2.0 / math.pi)


def _gelu_tanh(x):
    # TODO(synk): nn.GELU() defaults to the exact erf form; tanh approximation used
    # because erf has no guaranteed Mosaic lowering (max abs deviation ~3e-3).
    return 0.5 * x * (1.0 + jnp.tanh(_GELU_C * (x + 0.044715 * x * x * x)))


def _channel_ln(x, gamma, beta, eps):
    """LayerNormChannel: normalize over the channel (last / lane) axis."""
    mean = jnp.mean(x, axis=-1, keepdims=True)
    xc = x - mean
    var = jnp.mean(xc * xc, axis=-1, keepdims=True)
    return xc * lax.rsqrt(var + eps) * gamma + beta


def _sparse_topk_softmax(logits, top_k):
    """softmax over experts, then keep the top_k largest values, zero the rest
    (= torch.softmax + torch.topk + scatter; exact float ties keep all tied)."""
    m = jnp.max(logits, axis=-1, keepdims=True)
    e = jnp.exp(logits - m)
    gate = e / jnp.sum(e, axis=-1, keepdims=True)
    cnt = jnp.zeros_like(gate)
    for j in range(logits.shape[-1]):                    # num_experts=6, static unroll
        cnt = cnt + (gate[:, j:j + 1] > gate).astype(gate.dtype)
    return jnp.where(cnt < top_k, gate, 0.0)


# ----------------------------------------------------------------------------
# Pallas plumbing helpers
# ----------------------------------------------------------------------------

_ROW_TILE = 256  # fills the MXU M dim on v6e/v7x; multiple of 8 (v5e 128-row MXU ok)


def _row_tile_for(rows):
    if rows >= _ROW_TILE:
        return _ROW_TILE
    return max(8, ((rows + 7) // 8) * 8)      # single tile for small token counts


def _pad_rows(a, padded_rows):
    if a.shape[0] == padded_rows:
        return a
    pad = [(0, padded_rows - a.shape[0])] + [(0, 0)] * (a.ndim - 1)
    return jnp.pad(a, pad)


def _mosaic_params():
    # "parallel": every row tile is independent -> v7x shards over both TCs.
    # 32 MiB scoped VMEM: tiles + resident expert weights fit with large headroom.
    return pltpu.CompilerParams(dimension_semantics=("parallel",),
                                vmem_limit_bytes=32 * 1024 * 1024)


# ----------------------------------------------------------------------------
# Kernel 1: channel LayerNorm over tokens  (LayerNormChannel / attention_norm)
# ----------------------------------------------------------------------------

def _ln_kernel(x_ref, g_ref, b_ref, o_ref, *, eps):
    x = x_ref[...].astype(jnp.float32)
    o_ref[...] = _channel_ln(x, g_ref[...], b_ref[...], eps).astype(o_ref.dtype)


@functools.lru_cache(maxsize=None)
def _build_ln_call(nblk, br, C, eps, out_dtype):
    return pl.pallas_call(
        functools.partial(_ln_kernel, eps=eps),
        out_shape=jax.ShapeDtypeStruct((nblk * br, C), jnp.dtype(out_dtype)),
        grid=(nblk,),
        in_specs=[pl.BlockSpec((br, C), lambda i: (i, 0)),
                  pl.BlockSpec((1, C), lambda i: (0, 0)),
                  pl.BlockSpec((1, C), lambda i: (0, 0))],
        out_specs=pl.BlockSpec((br, C), lambda i: (i, 0)),
        compiler_params=_mosaic_params(),
    )


def ln_channel(x, gamma, beta, eps, use_pallas=True):
    """x: (rows, C) token-major; LayerNorm over the channel axis."""
    rows, C = x.shape
    if not use_pallas:
        return _channel_ln(x.astype(jnp.float32), gamma[None, :], beta[None, :],
                           eps).astype(x.dtype)
    br = _row_tile_for(rows)
    nblk = (rows + br - 1) // br
    padded = nblk * br
    call = _build_ln_call(nblk, br, C, float(eps), jnp.dtype(x.dtype).name)
    out = call(_pad_rows(x, padded), gamma.reshape(1, C), beta.reshape(1, C))
    return out[:rows]


# ----------------------------------------------------------------------------
# Kernel 2: patch embedding (Conv3d k=p,s=p as matmul) + LayerNormChannel
# ----------------------------------------------------------------------------

def _patch_embed_ln_kernel(pt_ref, w_ref, b_ref, g_ref, be_ref, o_ref, *, eps):
    # bf16 MXU operands, f32 accumulation; LN statistics in f32.
    acc = jnp.dot(pt_ref[...], w_ref[...],
                  preferred_element_type=jnp.float32) + b_ref[...]
    o_ref[...] = _channel_ln(acc, g_ref[...], be_ref[...], eps).astype(o_ref.dtype)


@functools.lru_cache(maxsize=None)
def _build_patch_embed_call(nblk, br, K, C, eps):
    return pl.pallas_call(
        functools.partial(_patch_embed_ln_kernel, eps=eps),
        out_shape=jax.ShapeDtypeStruct((nblk * br, C), jnp.float32),
        grid=(nblk,),
        in_specs=[pl.BlockSpec((br, K), lambda i: (i, 0)),   # patch tokens
                  pl.BlockSpec((K, C), lambda i: (0, 0)),    # resident weight
                  pl.BlockSpec((1, C), lambda i: (0, 0)),    # conv bias
                  pl.BlockSpec((1, C), lambda i: (0, 0)),    # LN gamma
                  pl.BlockSpec((1, C), lambda i: (0, 0))],   # LN beta
        out_specs=pl.BlockSpec((br, C), lambda i: (i, 0)),
        compiler_params=_mosaic_params(),
    )


def patch_embed_ln(tokens, w, b, gamma, beta, eps, use_pallas=True):
    """tokens: (rows, K=p^3*Cin); w: (K, C). Returns (rows, C) f32."""
    rows, K = tokens.shape
    C = w.shape[1]
    t16 = tokens.astype(jnp.bfloat16)
    w16 = w.astype(jnp.bfloat16)
    if not use_pallas:
        acc = jnp.dot(t16, w16, preferred_element_type=jnp.float32) + b[None, :]
        return _channel_ln(acc, gamma[None, :], beta[None, :], eps)
    br = _row_tile_for(rows)
    nblk = (rows + br - 1) // br
    padded = nblk * br
    call = _build_patch_embed_call(nblk, br, K, C, float(eps))
    out = call(_pad_rows(t16, padded), w16, b.reshape(1, C),
               gamma.reshape(1, C), beta.reshape(1, C))
    return out[:rows]


# ----------------------------------------------------------------------------
# Kernel 3: fused ffn_norm -> *attention -> MoE gate (top-3 sparse softmax)
#           -> 6 experts (1x1 conv, GELU, 1x1 conv) -> combine -> +residual
# ----------------------------------------------------------------------------

def _moe_kernel(h_ref, aw_ref, g_ref, be_ref, wg_ref, bg_ref,
                w1_ref, b1_ref, w2_ref, b2_ref, o_ref,
                *, eps, num_experts, top_k):
    h = h_ref[...].astype(jnp.float32)                 # residual input (pre-LN)
    aw = aw_ref[...].astype(jnp.float32)               # (TR, 1) spatial attention
    y = _channel_ln(h, g_ref[...], be_ref[...], eps)   # ffn_norm, f32 stats
    z = y * aw                                         # MoE input x*attention_weights
    z16 = z.astype(jnp.bfloat16)

    # gate logits: 1x1x1 Conv3d(dim -> E), then scaled by attention before softmax
    logits = (jnp.dot(z16, wg_ref[...], preferred_element_type=jnp.float32)
              + bg_ref[...]) * aw
    gate = _sparse_topk_softmax(logits, top_k)         # (TR, E)

    out = h                                            # BlockPool: ffn(...) + h
    for e in range(num_experts):                       # static unroll, E=6
        hid = jnp.dot(z16, w1_ref[e],
                      preferred_element_type=jnp.float32) + b1_ref[e]
        eo = jnp.dot(_gelu_tanh(hid).astype(jnp.bfloat16), w2_ref[e],
                     preferred_element_type=jnp.float32) + b2_ref[e]
        out = out + gate[:, e:e + 1] * eo
    o_ref[...] = out.astype(o_ref.dtype)


@functools.lru_cache(maxsize=None)
def _build_moe_call(nblk, br, C, E, Hd, eps, out_dtype):
    kern = functools.partial(_moe_kernel, eps=eps, num_experts=E, top_k=3)
    return pl.pallas_call(
        kern,
        out_shape=jax.ShapeDtypeStruct((nblk * br, C), jnp.dtype(out_dtype)),
        grid=(nblk,),
        in_specs=[pl.BlockSpec((br, C), lambda i: (i, 0)),        # residual h
                  pl.BlockSpec((br, 1), lambda i: (i, 0)),        # attention weights
                  pl.BlockSpec((1, C), lambda i: (0, 0)),         # ffn_norm gamma
                  pl.BlockSpec((1, C), lambda i: (0, 0)),         # ffn_norm beta
                  pl.BlockSpec((C, E), lambda i: (0, 0)),         # gate W
                  pl.BlockSpec((1, E), lambda i: (0, 0)),         # gate b
                  pl.BlockSpec((E, C, Hd), lambda i: (0, 0, 0)),  # experts W1
                  pl.BlockSpec((E, 1, Hd), lambda i: (0, 0, 0)),  # experts b1
                  pl.BlockSpec((E, Hd, C), lambda i: (0, 0, 0)),  # experts W2
                  pl.BlockSpec((E, 1, C), lambda i: (0, 0, 0))],  # experts b2
        out_specs=pl.BlockSpec((br, C), lambda i: (i, 0)),
        compiler_params=_mosaic_params(),
    )


def moe_ffn(h, aw, gamma, beta, wg, bg, w1, b1, w2, b2, eps, use_pallas=True):
    """h: (rows, C) residual input; aw: (rows, 1). Returns ffn(...)+h, (rows, C)."""
    rows, C = h.shape
    E = wg.shape[1]
    Hd = w1.shape[2]
    wg16 = wg.astype(jnp.bfloat16)
    w116 = w1.astype(jnp.bfloat16)
    w216 = w2.astype(jnp.bfloat16)

    if not use_pallas:
        hf = h.astype(jnp.float32)
        awf = aw.astype(jnp.float32)
        y = _channel_ln(hf, gamma[None, :], beta[None, :], eps)
        z = y * awf
        z16 = z.astype(jnp.bfloat16)
        logits = (jnp.dot(z16, wg16, preferred_element_type=jnp.float32)
                  + bg[None, :]) * awf
        gate = _sparse_topk_softmax(logits, 3)
        out = hf
        for e in range(E):
            hid = jnp.dot(z16, w116[e], preferred_element_type=jnp.float32) + b1[e]
            eo = jnp.dot(_gelu_tanh(hid).astype(jnp.bfloat16), w216[e],
                         preferred_element_type=jnp.float32) + b2[e]
            out = out + gate[:, e:e + 1] * eo
        return out.astype(h.dtype)

    br = _row_tile_for(rows)
    nblk = (rows + br - 1) // br
    padded = nblk * br
    call = _build_moe_call(nblk, br, C, E, Hd, float(eps), jnp.dtype(h.dtype).name)
    out = call(_pad_rows(h, padded), _pad_rows(aw, padded),
               gamma.reshape(1, C), beta.reshape(1, C),
               wg16, bg.reshape(1, E), w116, b1, w216, b2)
    return out[:rows]


# ----------------------------------------------------------------------------
# Plain-JAX pieces (general 3-D convs / window ops; shared by both paths)
# ----------------------------------------------------------------------------

def _conv3d(x, w, b, stride, pad):
    """x: NDHWC, w: DHWIO."""
    dn = lax.conv_dimension_numbers(x.shape, w.shape, ('NDHWC', 'DHWIO', 'NDHWC'))
    y = lax.conv_general_dilated(x, w, (stride,) * 3, [(pad, pad)] * 3,
                                 dimension_numbers=dn)
    return y if b is None else y + b


def _instance_norm_relu(x, eps=1e-5):
    # nn.InstanceNorm3d default: affine=False, biased variance over (D,H,W)
    m = jnp.mean(x, axis=(1, 2, 3), keepdims=True)
    v = jnp.mean((x - m) ** 2, axis=(1, 2, 3), keepdims=True)
    return jnp.maximum((x - m) * lax.rsqrt(v + eps), 0.0)


def _two_conv(x, p):
    # TODO(synk): general 3x3x3 Conv3d left to lax.conv (no bespoke Pallas conv here)
    x = _instance_norm_relu(_conv3d(x, p['w1'], p['b1'], 1, 1))
    x = _instance_norm_relu(_conv3d(x, p['w2'], p['b2'], 1, 1))
    return x


def _avg_pool3(x):
    # nn.AvgPool3d(3, 1, padding=1), count_include_pad=True -> fixed /27 divisor
    s = lax.reduce_window(x, 0.0, lax.add, (1, 3, 3, 3, 1), (1, 1, 1, 1, 1),
                          [(0, 0), (1, 1), (1, 1), (1, 1), (0, 0)])
    return s / 27.0


def _cbam(x, p):
    # ChannelAttention: global avg/max pool -> shared 2-layer 1x1 MLP -> sigmoid
    avg = jnp.mean(x, axis=(1, 2, 3))                    # (B, C)
    mx = jnp.max(x, axis=(1, 2, 3))                      # (B, C)

    def mlp(v):
        return jnp.maximum(v @ p['ca_w1'], 0.0) @ p['ca_w2']

    ca = jax.nn.sigmoid(mlp(avg) + mlp(mx))              # (B, C)
    xca = x * ca[:, None, None, None, :]
    # SpatialAttention: channel mean/max -> 7x7x7 conv (no bias) -> sigmoid
    s = jnp.concatenate([jnp.mean(xca, axis=-1, keepdims=True),
                         jnp.max(xca, axis=-1, keepdims=True)], axis=-1)
    s = _conv3d(s, p['sa_w'], None, 1, 3)
    return jax.nn.sigmoid(s)                             # (B, D, H, W, 1)


def _extract_patches(x, p):
    """x: (B, D, H, W, C) -> (B*nD*nH*nW, p^3*C) with (pd, ph, pw, c) flatten order."""
    B, D, H, W, C = x.shape
    assert D % p == 0 and H % p == 0 and W % p == 0
    nD, nH, nW = D // p, H // p, W // p
    x = x.reshape(B, nD, p, nH, p, nW, p, C)
    x = x.transpose(0, 1, 3, 5, 2, 4, 6, 7)              # B nD nH nW p p p C
    return x.reshape(B * nD * nH * nW, p * p * p * C), (B, nD, nH, nW)


# ----------------------------------------------------------------------------
# Model assembly (BlockPool / Poolformer / PoolformerEncoder)
# ----------------------------------------------------------------------------

def _block_pool(x, aw, p, use_pallas):
    B, D, H, W, C = x.shape
    rows = B * D * H * W
    h = x
    ln1 = ln_channel(x.reshape(rows, C), p['ln1_g'], p['ln1_b'], 1e-6,
                     use_pallas).reshape(x.shape)
    x = _avg_pool3(ln1) + ln1 + h                        # attn(norm(x)) + norm(x) + x
    out = moe_ffn(x.reshape(rows, C), aw.reshape(rows, 1),
                  p['ln2_g'], p['ln2_b'], p['gate_w'], p['gate_b'],
                  p['w1'], p['b1'], p['w2'], p['b2'], 1e-6, use_pallas)
    return out.reshape(x.shape)


def _poolformer_stage(x, p, use_pallas):
    tokens, (B, nD, nH, nW) = _extract_patches(x, p['patch'])
    C = p['pe_w'].shape[1]
    emb = patch_embed_ln(tokens, p['pe_w'], p['pe_b'], p['emb_g'], p['emb_b'],
                         1e-5, use_pallas)
    x = emb.reshape(B, nD, nH, nW, C)
    aw = _cbam(x, p)                                     # (B, nD, nH, nW, 1)
    for blk in p['blocks']:                              # num_layers = 2
        x = _block_pool(x, aw, blk, use_pallas)
    return x


def poolformer_encoder(params, x, use_pallas=True):
    """x: (B, C, D, H, W) like the PyTorch module. Returns (x4, x3, x2, x1, x0) NCDHW."""
    x = jnp.transpose(x, (0, 2, 3, 4, 1))                # channel-last (lane-dense)
    x0 = _two_conv(x, params['conv0'])
    x1 = _poolformer_stage(x0, params['down1'], use_pallas)
    x2 = _poolformer_stage(x1, params['down2'], use_pallas)
    x3 = _poolformer_stage(x2, params['down3'], use_pallas)
    x4 = _poolformer_stage(x3, params['down4'], use_pallas)
    back = lambda t: jnp.transpose(t, (0, 4, 1, 2, 3))
    return tuple(back(t) for t in (x4, x3, x2, x1, x0))


# ----------------------------------------------------------------------------
# Deterministic parameter construction
# ----------------------------------------------------------------------------

def _init_stage(key, c_in, c_out, patch, num_experts=6, ratio=16):
    # get_config() isn't provided by the spec; mlp_dim taken as 2*hidden_size
    # (matching the mlp_size=fea*2 the encoder passes to Poolformer).
    hd = 2 * c_out
    k = jax.random.split(key, 8)
    nrm = lambda kk, s: (0.02 * jax.random.normal(kk, s)).astype(jnp.float32)
    cr = max(1, c_out // ratio)
    p = dict(
        patch=patch,
        pe_w=nrm(k[0], (patch ** 3 * c_in, c_out)),
        pe_b=jnp.zeros((c_out,), jnp.float32),
        emb_g=jnp.ones((c_out,), jnp.float32),
        emb_b=jnp.zeros((c_out,), jnp.float32),
        ca_w1=nrm(k[1], (c_out, cr)),
        ca_w2=nrm(k[2], (cr, c_out)),
        sa_w=nrm(k[3], (7, 7, 7, 2, 1)),
        blocks=[],
    )
    for i in range(2):
        bk = jax.random.split(k[4 + i], 3)
        p['blocks'].append(dict(
            ln1_g=jnp.ones((c_out,), jnp.float32), ln1_b=jnp.zeros((c_out,), jnp.float32),
            ln2_g=jnp.ones((c_out,), jnp.float32), ln2_b=jnp.zeros((c_out,), jnp.float32),
            gate_w=nrm(bk[0], (c_out, num_experts)),
            gate_b=jnp.zeros((num_experts,), jnp.float32),
            w1=nrm(bk[1], (num_experts, c_out, hd)),
            b1=jnp.zeros((num_experts, 1, hd), jnp.float32),
            w2=nrm(bk[2], (num_experts, hd, c_out)),
            b2=jnp.zeros((num_experts, 1, c_out), jnp.float32),
        ))
    return p


def init_encoder_params(key, in_channels, features, pool_size):
    k = jax.random.split(key, 6)
    nrm = lambda kk, s: (0.02 * jax.random.normal(kk, s)).astype(jnp.float32)
    params = dict(conv0=dict(
        w1=nrm(k[0], (3, 3, 3, in_channels, features[0])),
        b1=jnp.zeros((features[0],), jnp.float32),
        w2=nrm(k[1], (3, 3, 3, features[0], features[0])),
        b2=jnp.zeros((features[0],), jnp.float32)))
    for i in range(4):
        params[f'down{i + 1}'] = _init_stage(k[2 + i], features[i], features[i + 1],
                                             pool_size[i])
    return params


# ----------------------------------------------------------------------------
# Demo / self-check
# ----------------------------------------------------------------------------

if __name__ == "__main__":
    key = jax.random.PRNGKey(0)
    kx, kp = jax.random.split(key)

    B, Cin = 2, 2
    features = (8, 16, 32, 64, 128)        # last stage is lane-dense (128 channels)
    pool_size = (2, 2, 2, 2)
    img = 16

    x = jax.random.normal(kx, (B, Cin, img, img, img), jnp.float32)
    params = init_encoder_params(kp, Cin, features, pool_size)

    outs = poolformer_encoder(params, x, use_pallas=True)
    outs = jax.block_until_ready(outs)

    # Pure-JAX path with identical math: checks the Pallas tiling/padding plumbing.
    refs = poolformer_encoder(params, x, use_pallas=False)
    refs = jax.block_until_ready(refs)

    for o, r in zip(outs, refs):
        assert o.shape == r.shape
        assert bool(jnp.all(jnp.isfinite(o))), "non-finite output from Pallas path"
        err = float(jnp.max(jnp.abs(o - r))) / (float(jnp.max(jnp.abs(r))) + 1e-6)
        assert err < 5e-2, f"Pallas output mismatch vs reference (rel max err {err})"

    print("KERNEL_OK")
</pallas_src>

<mosaic_0001>
module attributes {stable_mosaic.version = 11 : i64} {
  func.func @_patch_embed_ln_kernel(%arg0: i32, %arg1: memref<256x64xbf16, #tpu.memory_space<vmem>>, %arg2: memref<64x16xbf16, #tpu.memory_space<vmem>>, %arg3: memref<1x16xf32, #tpu.memory_space<vmem>>, %arg4: memref<1x16xf32, #tpu.memory_space<vmem>>, %arg5: memref<1x16xf32, #tpu.memory_space<vmem>>, %arg6: memref<256x16xf32, #tpu.memory_space<vmem>>) attributes {dimension_semantics = [#tpu.dimension_semantics<parallel>], iteration_bounds = array<i64: 4>, scalar_prefetch = 0 : i64, scratch_operands = 0 : i64, tpu.core_type = #tpu.core_type<tc>, window_params = [{transform_indices = @transform_0, window_bounds = array<i64: 256, 64>}, {pipeline_mode = #tpu.pipeline_mode<synchronous>, transform_indices = @transform_1, window_bounds = array<i64: 64, 16>}, {pipeline_mode = #tpu.pipeline_mode<synchronous>, transform_indices = @transform_2, window_bounds = array<i64: 1, 16>}, {pipeline_mode = #tpu.pipeline_mode<synchronous>, transform_indices = @transform_3, window_bounds = array<i64: 1, 16>}, {pipeline_mode = #tpu.pipeline_mode<synchronous>, transform_indices = @transform_4, window_bounds = array<i64: 1, 16>}, {transform_indices = @transform_5, window_bounds = array<i64: 256, 16>}]} {
    %c0 = arith.constant 0 : index
    %c0_0 = arith.constant 0 : index
    %0 = vector.load %arg1[%c0, %c0_0] : memref<256x64xbf16, #tpu.memory_space<vmem>>, vector<256x64xbf16>
    %c0_1 = arith.constant 0 : index
    %c0_2 = arith.constant 0 : index
    %1 = vector.load %arg2[%c0_1, %c0_2] : memref<64x16xbf16, #tpu.memory_space<vmem>>, vector<64x16xbf16>
    %cst = arith.constant dense<0.000000e+00> : vector<256x16xf32>
    %2 = tpu.matmul %0, %1, %cst {dimension_numbers = #tpu.dot_dimension_numbers<[1], [0], [0], [1], [0, 0, 1, 1], [], []>} : vector<256x64xbf16>, vector<64x16xbf16>, vector<256x16xf32> -> vector<256x16xf32>
    %c0_3 = arith.constant 0 : index
    %c0_4 = arith.constant 0 : index
    %3 = vector.load %arg3[%c0_3, %c0_4] : memref<1x16xf32, #tpu.memory_space<vmem>>, vector<1x16xf32>
    %4 = vector.broadcast %3 : vector<1x16xf32> to vector<256x16xf32>
    %5 = arith.addf %2, %4 : vector<256x16xf32>
    %c0_5 = arith.constant 0 : index
    %c0_6 = arith.constant 0 : index
    %6 = vector.load %arg4[%c0_5, %c0_6] : memref<1x16xf32, #tpu.memory_space<vmem>>, vector<1x16xf32>
    %c0_7 = arith.constant 0 : index
    %c0_8 = arith.constant 0 : index
    %7 = vector.load %arg5[%c0_7, %c0_8] : memref<1x16xf32, #tpu.memory_space<vmem>>, vector<1x16xf32>
    %cst_9 = arith.constant dense<0.000000e+00> : vector<256xf32>
    %8 = vector.multi_reduction <add>, %5, %cst_9 [1] : vector<256x16xf32> to vector<256xf32>
    %9 = vector.shape_cast %8 : vector<256xf32> to vector<256x1xf32>
    %cst_10 = arith.constant 1.600000e+01 : f32
    %10 = vector.broadcast %cst_10 : f32 to vector<256x1xf32>
    %11 = arith.divf %9, %10 : vector<256x1xf32>
    %12 = vector.broadcast %11 : vector<256x1xf32> to vector<256x16xf32>
    %13 = arith.subf %5, %12 : vector<256x16xf32>
    %14 = arith.mulf %13, %13 : vector<256x16xf32>
    %cst_11 = arith.constant dense<0.000000e+00> : vector<256xf32>
    %15 = vector.multi_reduction <add>, %14, %cst_11 [1] : vector<256x16xf32> to vector<256xf32>
    %16 = vector.shape_cast %15 : vector<256xf32> to vector<256x1xf32>
    %cst_12 = arith.constant 1.600000e+01 : f32
    %17 = vector.broadcast %cst_12 : f32 to vector<256x1xf32>
    %18 = arith.divf %16, %17 : vector<256x1xf32>
    %cst_13 = arith.constant 9.99999974E-6 : f32
    %19 = vector.broadcast %cst_13 : f32 to vector<256x1xf32>
    %20 = arith.addf %18, %19 : vector<256x1xf32>
    %21 = math.rsqrt %20 : vector<256x1xf32>
    %22 = vector.broadcast %21 : vector<256x1xf32> to vector<256x16xf32>
    %23 = arith.mulf %13, %22 : vector<256x16xf32>
    %24 = vector.broadcast %6 : vector<1x16xf32> to vector<256x16xf32>
    %25 = arith.mulf %23, %24 : vector<256x16xf32>
    %26 = vector.broadcast %7 : vector<1x16xf32> to vector<256x16xf32>
    %27 = arith.addf %25, %26 : vector<256x16xf32>
    %c0_14 = arith.constant 0 : index
    %c0_15 = arith.constant 0 : index
    %28 = vector.load %arg6[%c0_14, %c0_15] : memref<256x16xf32, #tpu.memory_space<vmem>>, vector<256x16xf32>
    tpu.vector_store %arg6[%c0_14, %c0_15], %27 {strides = array<i32>} : memref<256x16xf32, #tpu.memory_space<vmem>>, vector<256x16xf32>,
    return
  }
  func.func @transform_0(%arg0: i32) -> (i32, i32) {
    %c0_i32 = arith.constant 0 : i32
    %c0_i32_0 = arith.constant 0 : i32
    return %arg0, %c0_i32 : i32, i32
  }
  func.func @transform_1(%arg0: i32) -> (i32, i32) {
    %c0_i32 = arith.constant 0 : i32
    %c0_i32_0 = arith.constant 0 : i32
    %c0_i32_1 = arith.constant 0 : i32
    return %c0_i32, %c0_i32_0 : i32, i32
  }
  func.func @transform_2(%arg0: i32) -> (i32, i32) {
    %c0_i32 = arith.constant 0 : i32
    %c0_i32_0 = arith.constant 0 : i32
    %c0_i32_1 = arith.constant 0 : i32
    return %c0_i32, %c0_i32_0 : i32, i32
  }
  func.func @transform_3(%arg0: i32) -> (i32, i32) {
    %c0_i32 = arith.constant 0 : i32
    %c0_i32_0 = arith.constant 0 : i32
    %c0_i32_1 = arith.constant 0 : i32
    return %c0_i32, %c0_i32_0 : i32, i32
  }
  func.func @transform_4(%arg0: i32) -> (i32, i32) {
    %c0_i32 = arith.constant 0 : i32
    %c0_i32_0 = arith.constant 0 : i32
    %c0_i32_1 = arith.constant 0 : i32
    return %c0_i32, %c0_i32_0 : i32, i32
  }
  func.func @transform_5(%arg0: i32) -> (i32, i32) {
    %c0_i32 = arith.constant 0 : i32
    %c0_i32_0 = arith.constant 0 : i32
    return %arg0, %c0_i32 : i32, i32
  }
}

</mosaic_0001>

<llo_original>
// kernel: tpu_custom_call.1
$region0: #{tpu_custom_call.1}
  #allocation0 [shape = 'u32[]', space=smem, size = 0x4, offset = 0x4, fixed_abs, tag = 'smem constant byte address 0x4 - core index']
  #allocation1 [shape = 'u32[72,128]{1,0:T(1,128)}', space=vmem, size = 0x9000, scoped, tag = 'internal scratch']
  %s0 = inlined_call_operand.vmem [shape: bf16[1024,64], index: 0, kind: input, shape index: {}]
  %s1 = inlined_call_operand.vmem [shape: bf16[64,16], index: 1, kind: input, shape index: {}]
  %s2 = inlined_call_operand.vmem [shape: f32[1,16], index: 2, kind: input, shape index: {}]
  %s3 = inlined_call_operand.vmem [shape: f32[1,16], index: 3, kind: input, shape index: {}]
  %s4 = inlined_call_operand.vmem [shape: f32[1,16], index: 4, kind: input, shape index: {}]
  %s5 = inlined_call_operand.vmem [shape: f32[1024,16], index: 5, kind: output, shape index: {}]
  %s6 = sld [smem:[#allocation0]]
  $region53: #{tpu_custom_call.1} parent=0
    _
  %s8 = ssub.s32 1, %s6
  %s9 = scalar_select 0, %s8, %s6
  loop: start=0, step=1, limit=6
  $region2: #{tpu_custom_call.1} parent=0 // loop_pre_header
    _
  $region3: #{tpu_custom_call.1} parent=0 // loop_header
    %s11 = sphi 0, %s15
    %p12 = scmp.ge.s32.totalorder %s11, 6
    %s21 = sphi 0, %s23
    %s24 = sphi 0, %s21
    %s25 = sphi 0, %s24
    %s41 = sphi 0, %s25
    %s45 = sphi 0, %s45
    %s47 = sphi 0, %s45
    %s48 = sphi 0, %s47
    %s62 = sphi 0, %s48
    %s66 = sphi 0, %s66
    %s68 = sphi 0, %s66
    %s69 = sphi 0, %s68
    %s83 = sphi 0, %s69
    %s87 = sphi 0, %s87
    %s89 = sphi 0, %s87
    %s90 = sphi 0, %s89
    %s104 = sphi 0, %s90
    %s108 = sphi 0, %s108
    %s110 = sphi 0, %s108
    %s111 = sphi 0, %s110
    %s125 = sphi 0, %s111
    %s131 = sphi 0, %s133
    %s134 = sphi 0, %s131
    %s135 = sphi 0, %s134
    %s151 = sphi 0, %s135
  $region4: #{tpu_custom_call.1} parent=0 // loop_header_branch
    %14 = sbr.rel (%p12) target = $region8
  $region5: #{tpu_custom_call.1} parent=0 // loop_body
    %s16 = ssub.s32 %s11, 1
    %s17 = ssub.s32 %s11, 2
    %s18 = sadd.s32 %s11, 1
    %s19 = ssub.s32 %s11, %s18
    %p20 = scmp.eq.s32.totalorder %s19, 0
    %s22 = sadd.s32 %s21, 1
    %s23 = scalar_select %p20, %s21, %s22
    %p26 = pneg %p20
    %p27 = scmp.eq.s32.totalorder %s11, 3
    %p28 = por %p26, %p27
    %p29 = scmp.ne.s32.totalorder %s21, %s24
    %p30 = scmp.eq.s32.totalorder %s11, 0
    %p31 = por %p29, %p30
    %p32 = scmp.ne.s32.totalorder %s21, %s24
    %p33 = scmp.eq.s32.totalorder %s16, 3
    %p34 = por %p32, %p33
    %p35 = scmp.ne.s32.totalorder %s24, %s25
    %p36 = scmp.eq.s32.totalorder %s16, 0
    %p37 = por %p35, %p36
    %p38 = scmp.ne.s32.totalorder %s24, %s25
    %p39 = scmp.eq.s32.totalorder %s17, 3
    %p40 = por %p38, %p39
    %p42 = scmp.ne.s32.totalorder %s25, %s41
    %p43 = scmp.eq.s32.totalorder %s17, 0
    %p44 = por %p42, %p43
    %s46 = sadd.s32 %s45, 1
    %p49 = scmp.eq.s32.totalorder %s11, 3
    %p50 = scmp.ne.s32.totalorder %s45, %s47
    %p51 = scmp.eq.s32.totalorder %s11, 0
    %p52 = por %p50, %p51
    %p53 = scmp.ne.s32.totalorder %s45, %s47
    %p54 = scmp.eq.s32.totalorder %s16, 3
    %p55 = por %p53, %p54
    %p56 = scmp.ne.s32.totalorder %s47, %s48
    %p57 = scmp.eq.s32.totalorder %s16, 0
    %p58 = por %p56, %p57
    %p59 = scmp.ne.s32.totalorder %s47, %s48
    %p60 = scmp.eq.s32.totalorder %s17, 3
    %p61 = por %p59, %p60
    %p63 = scmp.ne.s32.totalorder %s48, %s62
    %p64 = scmp.eq.s32.totalorder %s17, 0
    %p65 = por %p63, %p64
    %s67 = sadd.s32 %s66, 1
    %p70 = scmp.eq.s32.totalorder %s11, 3
    %p71 = scmp.ne.s32.totalorder %s66, %s68
    %p72 = scmp.eq.s32.totalorder %s11, 0
    %p73 = por %p71, %p72
    %p74 = scmp.ne.s32.totalorder %s66, %s68
    %p75 = scmp.eq.s32.totalorder %s16, 3
    %p76 = por %p74, %p75
    %p77 = scmp.ne.s32.totalorder %s68, %s69
    %p78 = scmp.eq.s32.totalorder %s16, 0
    %p79 = por %p77, %p78
    %p80 = scmp.ne.s32.totalorder %s68, %s69
    %p81 = scmp.eq.s32.totalorder %s17, 3
    %p82 = por %p80, %p81
    %p84 = scmp.ne.s32.totalorder %s69, %s83
    %p85 = scmp.eq.s32.totalorder %s17, 0
    %p86 = por %p84, %p85
    %s88 = sadd.s32 %s87, 1
    %p91 = scmp.eq.s32.totalorder %s11, 3
    %p92 = scmp.ne.s32.totalorder %s87, %s89
    %p93 = scmp.eq.s32.totalorder %s11, 0
    %p94 = por %p92, %p93
    %p95 = scmp.ne.s32.totalorder %s87, %s89
    %p96 = scmp.eq.s32.totalorder %s16, 3
    %p97 = por %p95, %p96
    %p98 = scmp.ne.s32.totalorder %s89, %s90
    %p99 = scmp.eq.s32.totalorder %s16, 0
    %p100 = por %p98, %p99
    %p101 = scmp.ne.s32.totalorder %s89, %s90
    %p102 = scmp.eq.s32.totalorder %s17, 3
    %p103 = por %p101, %p102
    %p105 = scmp.ne.s32.totalorder %s90, %s104
    %p106 = scmp.eq.s32.totalorder %s17, 0
    %p107 = por %p105, %p106
    %s109 = sadd.s32 %s108, 1
    %p112 = scmp.eq.s32.totalorder %s11, 3
    %p113 = scmp.ne.s32.totalorder %s108, %s110
    %p114 = scmp.eq.s32.totalorder %s11, 0
    %p115 = por %p113, %p114
    %p116 = scmp.ne.s32.totalorder %s108, %s110
    %p117 = scmp.eq.s32.totalorder %s16, 3
    %p118 = por %p116, %p117
    %p119 = scmp.ne.s32.totalorder %s110, %s111
    %p120 = scmp.eq.s32.totalorder %s16, 0
    %p121 = por %p119, %p120
    %p122 = scmp.ne.s32.totalorder %s110, %s111
    %p123 = scmp.eq.s32.totalorder %s17, 3
    %p124 = por %p122, %p123
    %p126 = scmp.ne.s32.totalorder %s111, %s125
    %p127 = scmp.eq.s32.totalorder %s17, 0
    %p128 = por %p126, %p127
    %s129 = ssub.s32 %s11, %s18
    %p130 = scmp.eq.s32.totalorder %s129, 0
    %s132 = sadd.s32 %s131, 1
    %s133 = scalar_select %p130, %s131, %s132
    %p136 = pneg %p130
    %p137 = scmp.eq.s32.totalorder %s11, 3
    %p138 = por %p136, %p137
    %p139 = scmp.ne.s32.totalorder %s131, %s134
    %p140 = scmp.eq.s32.totalorder %s11, 0
    %p141 = por %p139, %p140
    %p142 = scmp.ne.s32.totalorder %s131, %s134
    %p143 = scmp.eq.s32.totalorder %s16, 3
    %p144 = por %p142, %p143
    %p145 = scmp.ne.s32.totalorder %s134, %s135
    %p146 = scmp.eq.s32.totalorder %s16, 0
    %p147 = por %p145, %p146
    %p148 = scmp.ne.s32.totalorder %s134, %s135
    %p149 = scmp.eq.s32.totalorder %s17, 3
    %p150 = por %p148, %p149
    %p152 = scmp.ne.s32.totalorder %s135, %s151
    %p153 = scmp.eq.s32.totalorder %s17, 0
    %p154 = por %p152, %p153
    %p155 = scmp.le.s32.totalorder 1, %s11
    %p156 = scmp.lt.s32.totalorder %s11, 5
    %p157 = pnand %p155, %p156
    %p158 = pneg %p157
    // Predicated region
    $region9: #{tpu_custom_call.1} parent=5 // pred_check
      _
    $region10: #{tpu_custom_call.1} parent=5 // pred_check_branch
      %160 = sbr.rel (%p157) target = $region12
    $region11: #{tpu_custom_call.1} parent=5 // pred_region
      %s161 = ssub.s32 %s11, 1
      // Predicated region
      $region13: #{tpu_custom_call.1} parent=11 // pred_check
        %p162 = pneg %p58
      $region14: #{tpu_custom_call.1} parent=11 // pred_check_branch
        %164 = sbr.rel (%p162) target = $region16
      $region15: #{tpu_custom_call.1} parent=11 // pred_region
        _
      $region16: #{tpu_custom_call.1} parent=11 // pred_fallthru
        _
      // Predicated region
      $region17: #{tpu_custom_call.1} parent=11 // pred_check
        %p165 = pneg %p79
      $region18: #{tpu_custom_call.1} parent=11 // pred_check_branch
        %167 = sbr.rel (%p165) target = $region20
      $region19: #{tpu_custom_call.1} parent=11 // pred_region
        _
      $region20: #{tpu_custom_call.1} parent=11 // pred_fallthru
        _
      // Predicated region
      $region21: #{tpu_custom_call.1} parent=11 // pred_check
        %p168 = pneg %p100
      $region22: #{tpu_custom_call.1} parent=11 // pred_check_branch
        %170 = sbr.rel (%p168) target = $region24
      $region23: #{tpu_custom_call.1} parent=11 // pred_region
        _
      $region24: #{tpu_custom_call.1} parent=11 // pred_fallthru
        _
      // Predicated region
      $region25: #{tpu_custom_call.1} parent=11 // pred_check
        %p171 = pneg %p121
      $region26: #{tpu_custom_call.1} parent=11 // pred_check_branch
        %173 = sbr.rel (%p171) target = $region28
      $region27: #{tpu_custom_call.1} parent=11 // pred_region
        _
      $region28: #{tpu_custom_call.1} parent=11 // pred_fallthru
        _
    $region12: #{tpu_custom_call.1} parent=5 // pred_fallthru
      _
    %p174 = scmp.lt.s32.totalorder %s11, 4
    // Predicated region
    $region29: #{tpu_custom_call.1} parent=5 // pred_check
      %p175 = pneg %p174
    $region30: #{tpu_custom_call.1} parent=5 // pred_check_branch
      %177 = sbr.rel (%p175) target = $region32
    $region31: #{tpu_custom_call.1} parent=5 // pred_region
      // Predicated region
      $region33: #{tpu_custom_call.1} parent=31 // pred_check
        %p178 = pneg %p31
      $region34: #{tpu_custom_call.1} parent=31 // pred_check_branch
        %180 = sbr.rel (%p178) target = $region36
      $region35: #{tpu_custom_call.1} parent=31 // pred_region
        %s181 = smul.u32 32, %s11
        %p182 = scmp.lt.s32.totalorder %s181, 127
        %s183 = scalar_select %p182, %s181, 127
        %s184 = smul.addr %s183, 4
        %s185 = scalar_lea.vmem %s0, %s184
        %s186 = smul.u32 32, %s11
      $region36: #{tpu_custom_call.1} parent=31 // pred_fallthru
        _
    $region32: #{tpu_custom_call.1} parent=5 // pred_fallthru
      _
    %p187 = scmp.le.s32.totalorder 1, %s11
    %p188 = scmp.lt.s32.totalorder %s11, 5
    %p189 = pnand %p187, %p188
    %p190 = pneg %p189
    // Predicated region
    $region37: #{tpu_custom_call.1} parent=5 // pred_check
      _
    $region38: #{tpu_custom_call.1} parent=5 // pred_check_branch
      %192 = sbr.rel (%p189) target = $region40
    $region39: #{tpu_custom_call.1} parent=5 // pred_region
      %s193 = ssub.s32 %s11, 1
      %s194 = smul.u32 32, %s16
      %p195 = scmp.lt.s32.totalorder %s194, 127
      %s196 = scalar_select %p195, %s194, 127
      %s197 = smul.addr %s196, 4
      %s198 = scalar_lea.vmem %s0, %s197
      %p199 = pneg %p37
      %p200 = pneg %p34
      %p201 = pneg %p58
      %p202 = pneg %p55
      %p203 = pneg %p79
      %p204 = pneg %p76
      %p205 = pneg %p100
      %p206 = pneg %p97
      %p207 = pneg %p121
      %p208 = pneg %p118
      %p209 = pneg %p147
      %p210 = pneg %p144
      %s211 = smul.u32 32, %s16
      %p212 = scmp.lt.s32.totalorder %s211, 127
      %s213 = scalar_select %p212, %s211, 127
      %s214 = smul.addr %s213, 8
      %s215 = scalar_lea.vmem %s5, %s214
      %s216 = smul.u32 32, %s16
      %p217 = scmp.lt.s32.totalorder %s216, 127
      %s218 = scalar_select %p217, %s216, 127
      %s219 = smul.addr %s218, 4
      %s220 = scalar_lea.vmem %s0, %s219
      %s221 = smul.u32 32, %s16
      %s222 = smul.u32 32, %s16
      %p223 = scmp.lt.s32.totalorder %s222, 127
      %s224 = scalar_select %p223, %s222, 127
      %s225 = smul.addr %s224, 8
      %s226 = scalar_lea.vmem %s5, %s225
      %s227 = smul.u32 32, %s16
      %v229 = vld [vmem:[%s220] sm:$0xf]
      %v230 = vld [vmem:[%s220 + $0x4] sm:$0xf]
      %v231 = vld [vmem:[%s220 + $0x8] sm:$0xf]
      %v232 = vld [vmem:[%s220 + $0xc] sm:$0xf]
      %v233 = vld [vmem:[%s220 + $0x10] sm:$0xf]
      %v234 = vld [vmem:[%s220 + $0x14] sm:$0xf]
      %v235 = vld [vmem:[%s220 + $0x18] sm:$0xf]
      %v236 = vld [vmem:[%s220 + $0x1c] sm:$0xf]
      %v237 = vld [vmem:[%s220 + $0x20] sm:$0xf]
      %v238 = vld [vmem:[%s220 + $0x24] sm:$0xf]
      %v239 = vld [vmem:[%s220 + $0x28] sm:$0xf]
      %v240 = vld [vmem:[%s220 + $0x2c] sm:$0xf]
      %v241 = vld [vmem:[%s220 + $0x30] sm:$0xf]
      %v242 = vld [vmem:[%s220 + $0x34] sm:$0xf]
      %v243 = vld [vmem:[%s220 + $0x38] sm:$0xf]
      %v244 = vld [vmem:[%s220 + $0x3c] sm:$0xf]
      %v245 = vld [vmem:[%s220 + $0x40] sm:$0xf]
      %v246 = vld [vmem:[%s220 + $0x44] sm:$0xf]
      %v247 = vld [vmem:[%s220 + $0x48] sm:$0xf]
      %v248 = vld [vmem:[%s220 + $0x4c] sm:$0xf]
      %v249 = vld [vmem:[%s220 + $0x50] sm:$0xf]
      %v250 = vld [vmem:[%s220 + $0x54] sm:$0xf]
      %v251 = vld [vmem:[%s220 + $0x58] sm:$0xf]
      %v252 = vld [vmem:[%s220 + $0x5c] sm:$0xf]
      %v253 = vld [vmem:[%s220 + $0x60] sm:$0xf]
      %v254 = vld [vmem:[%s220 + $0x64] sm:$0xf]
      %v255 = vld [vmem:[%s220 + $0x68] sm:$0xf]
      %v256 = vld [vmem:[%s220 + $0x6c] sm:$0xf]
      %v257 = vld [vmem:[%s220 + $0x70] sm:$0xf]
      %v258 = vld [vmem:[%s220 + $0x74] sm:$0xf]
      %v259 = vld [vmem:[%s220 + $0x78] sm:$0xf]
      %v260 = vld [vmem:[%s220 + $0x7c] sm:$0xf]
      %v261 = vld [vmem:[%s1] sm:$0xf]
      %v262 = vld [vmem:[%s1 + $0x4] sm:$0xf]
      %v263 = vld [vmem:[%s1 + $0x8] sm:$0xf]
      %v264 = vld [vmem:[%s1 + $0xc] sm:$0xf]
      %v265 = vld [vmem:[%s1 + $0x10] sm:$0xf]
      %v266 = vld [vmem:[%s1 + $0x14] sm:$0xf]
      %v267 = vld [vmem:[%s1 + $0x18] sm:$0xf]
      %v268 = vld [vmem:[%s1 + $0x1c] sm:$0xf]
      %v269 = vld [vmem:[%s2] sm:$0x1]
      %v271 = vperm.slane %v269, 0
      %v305 = vunpack.c.l.b16 %v229
      %v306 = vunpack.c.l.b16 %v230
      %v307 = vunpack.c.l.b16 %v231
      %v308 = vunpack.c.l.b16 %v232
      %v309 = vunpack.c.l.b16 %v233
      %v310 = vunpack.c.l.b16 %v234
      %v311 = vunpack.c.l.b16 %v235
      %v312 = vunpack.c.l.b16 %v236
      %v313 = vunpack.c.l.b16 %v237
      %v314 = vunpack.c.l.b16 %v238
      %v315 = vunpack.c.l.b16 %v239
      %v316 = vunpack.c.l.b16 %v240
      %v317 = vunpack.c.l.b16 %v241
      %v318 = vunpack.c.l.b16 %v242
      %v319 = vunpack.c.l.b16 %v243
      %v320 = vunpack.c.l.b16 %v244
      %v321 = vunpack.c.l.b16 %v245
      %v322 = vunpack.c.l.b16 %v246
      %v323 = vunpack.c.l.b16 %v247
      %v324 = vunpack.c.l.b16 %v248
      %v325 = vunpack.c.l.b16 %v249
      %v326 = vunpack.c.l.b16 %v250
      %v327 = vunpack.c.l.b16 %v251
      %v328 = vunpack.c.l.b16 %v252
      %v329 = vunpack.c.l.b16 %v253
      %v330 = vunpack.c.l.b16 %v254
      %v331 = vunpack.c.l.b16 %v255
      %v332 = vunpack.c.l.b16 %v256
      %v333 = vunpack.c.l.b16 %v257
      %v334 = vunpack.c.l.b16 %v258
      %v335 = vunpack.c.l.b16 %v259
      %v336 = vunpack.c.l.b16 %v260
      %v337 = vpack.c.b16 %v306, %v305
      %v338 = vpack.c.b16 %v308, %v307
      %v339 = vpack.c.b16 %v310, %v309
      %v340 = vpack.c.b16 %v312, %v311
      %v341 = vpack.c.b16 %v314, %v313
      %v342 = vpack.c.b16 %v316, %v315
      %v343 = vpack.c.b16 %v318, %v317
      %v344 = vpack.c.b16 %v320, %v319
      %v345 = vpack.c.b16 %v322, %v321
      %v346 = vpack.c.b16 %v324, %v323
      %v347 = vpack.c.b16 %v326, %v325
      %v348 = vpack.c.b16 %v328, %v327
      %v349 = vpack.c.b16 %v330, %v329
      %v350 = vpack.c.b16 %v332, %v331
      %v351 = vpack.c.b16 %v334, %v333
      %v352 = vpack.c.b16 %v336, %v335
      %v361 = vunpack.c.l.b16 %v261
      %v362 = vunpack.c.l.b16 %v262
      %v363 = vunpack.c.l.b16 %v263
      %v364 = vunpack.c.l.b16 %v264
      %v365 = vunpack.c.l.b16 %v265
      %v366 = vunpack.c.l.b16 %v266
      %v367 = vunpack.c.l.b16 %v267
      %v368 = vunpack.c.l.b16 %v268
      %v369 = vpack.c.b16 %v362, %v361
      %v370 = vpack.c.b16 %v364, %v363
      %v371 = vpack.c.b16 %v366, %v365
      %v372 = vpack.c.b16 %v368, %v367
      %vm377 = vcmask 523264
      %v379 = vsel %vm377, %v337, 0
      %v382 = vsel %vm377, %v338, 0
      %v385 = vsel %vm377, %v339, 0
      %v388 = vsel %vm377, %v340, 0
      %v391 = vsel %vm377, %v341, 0
      %v394 = vsel %vm377, %v342, 0
      %v397 = vsel %vm377, %v343, 0
      %v400 = vsel %vm377, %v344, 0
      %v403 = vsel %vm377, %v345, 0
      %v406 = vsel %vm377, %v346, 0
      %v409 = vsel %vm377, %v347, 0
      %v412 = vsel %vm377, %v348, 0
      %v415 = vsel %vm377, %v349, 0
      %v418 = vsel %vm377, %v350, 0
      %v421 = vsel %vm377, %v351, 0
      %v424 = vsel %vm377, %v352, 0
      %426 = vmatpush.bf16.msra.mxu0 0
      %427 = vmatpush.bf16.msra.mxu0 0
      %428 = vmatpush.bf16.msra.mxu0 0
      %429 = vmatpush.bf16.msra.mxu0 0
      %430 = vmatpush.bf16.msra.mxu0 %v372
      %431 = vmatpush.bf16.msra.mxu0 %v371
      %432 = vmatpush.bf16.msra.mxu0 %v370
      %433 = vmatpush.bf16.msra.mxu0 %v369
      %434 = vmatmul.bf16.gmra.mxu0 %v379
      %v435 = vpop.f32.mrf.mxu0
      %v436 = vadd.f32 %v271, %v435
      %v437 = vpop.f32.mrf.mxu0
      %v438 = vadd.f32 %v271, %v437
      %439 = vmatmul.bf16.gmra.mxu0 %v382
      %v440 = vpop.f32.mrf.mxu0
      %v441 = vadd.f32 %v271, %v440
      %v442 = vpop.f32.mrf.mxu0
      %v443 = vadd.f32 %v271, %v442
      %444 = vmatmul.bf16.gmra.mxu0 %v385
      %v445 = vpop.f32.mrf.mxu0
      %v446 = vadd.f32 %v271, %v445
      %v447 = vpop.f32.mrf.mxu0
      %v448 = vadd.f32 %v271, %v447
      %449 = vmatmul.bf16.gmra.mxu0 %v388
      %v450 = vpop.f32.mrf.mxu0
      %v451 = vadd.f32 %v271, %v450
      %v452 = vpop.f32.mrf.mxu0
      %v453 = vadd.f32 %v271, %v452
      %454 = vmatmul.bf16.gmra.mxu0 %v391
      %v455 = vpop.f32.mrf.mxu0
      %v456 = vadd.f32 %v271, %v455
      %v457 = vpop.f32.mrf.mxu0
      %v458 = vadd.f32 %v271, %v457
      %459 = vmatmul.bf16.gmra.mxu0 %v394
      %v460 = vpop.f32.mrf.mxu0
      %v461 = vadd.f32 %v271, %v460
      %v462 = vpop.f32.mrf.mxu0
      %v463 = vadd.f32 %v271, %v462
      %464 = vmatmul.bf16.gmra.mxu0 %v397
      %v465 = vpop.f32.mrf.mxu0
      %v466 = vadd.f32 %v271, %v465
      %v467 = vpop.f32.mrf.mxu0
      %v468 = vadd.f32 %v271, %v467
      %469 = vmatmul.bf16.gmra.mxu0 %v400
      %v470 = vpop.f32.mrf.mxu0
      %v471 = vadd.f32 %v271, %v470
      %v472 = vpop.f32.mrf.mxu0
      %v473 = vadd.f32 %v271, %v472
      %474 = vmatmul.bf16.gmra.mxu0 %v403
      %v475 = vpop.f32.mrf.mxu0
      %v476 = vadd.f32 %v271, %v475
      %v477 = vpop.f32.mrf.mxu0
      %v478 = vadd.f32 %v271, %v477
      %479 = vmatmul.bf16.gmra.mxu0 %v406
      %v480 = vpop.f32.mrf.mxu0
      %v481 = vadd.f32 %v271, %v480
      %v482 = vpop.f32.mrf.mxu0
      %v483 = vadd.f32 %v271, %v482
      %484 = vmatmul.bf16.gmra.mxu0 %v409
      %v485 = vpop.f32.mrf.mxu0
      %v486 = vadd.f32 %v271, %v485
      %v487 = vpop.f32.mrf.mxu0
      %v488 = vadd.f32 %v271, %v487
      %489 = vmatmul.bf16.gmra.mxu0 %v412
      %v490 = vpop.f32.mrf.mxu0
      %v491 = vadd.f32 %v271, %v490
      %v492 = vpop.f32.mrf.mxu0
      %v493 = vadd.f32 %v271, %v492
      %494 = vmatmul.bf16.gmra.mxu0 %v415
      %v495 = vpop.f32.mrf.mxu0
      %v496 = vadd.f32 %v271, %v495
      %v497 = vpop.f32.mrf.mxu0
      %v498 = vadd.f32 %v271, %v497
      %499 = vmatmul.bf16.gmra.mxu0 %v418
      %v500 = vpop.f32.mrf.mxu0
      %v501 = vadd.f32 %v271, %v500
      %v502 = vpop.f32.mrf.mxu0
      %v503 = vadd.f32 %v271, %v502
      %504 = vmatmul.bf16.gmra.mxu0 %v421
      %v505 = vpop.f32.mrf.mxu0
      %v506 = vadd.f32 %v271, %v505
      %v507 = vpop.f32.mrf.mxu0
      %v508 = vadd.f32 %v271, %v507
      %509 = vmatmul.bf16.gmra.mxu0 %v424
      %v510 = vpop.f32.mrf.mxu0
      %v511 = vadd.f32 %v271, %v510
      %v512 = vpop.f32.mrf.mxu0
      %v513 = vadd.f32 %v271, %v512
      %514 = vdwg.mxu0
      %v515 = vld [vmem:[%s3] sm:$0x1]
      %v516 = vld [vmem:[%s4] sm:$0x1]
      %vm517 = vcmask 130048
      %v518 = vsel %vm517, %v436, 0.0
      %519 = vadd.xlane.f32.xlu0 %v518
      %v520 = vpop.xlane.xlu0 %519
      %v521 = vsel %vm517, %v438, 0.0
      %522 = vadd.xlane.f32.xlu0 %v521
      %v523 = vpop.xlane.xlu0 %522
      %v524 = vsel %vm517, %v441, 0.0
      %525 = vadd.xlane.f32.xlu0 %v524
      %v526 = vpop.xlane.xlu0 %525
      %v527 = vsel %vm517, %v443, 0.0
      %528 = vadd.xlane.f32.xlu0 %v527
      %v529 = vpop.xlane.xlu0 %528
      %v530 = vsel %vm517, %v446, 0.0
      %531 = vadd.xlane.f32.xlu0 %v530
      %v532 = vpop.xlane.xlu0 %531
      %v533 = vsel %vm517, %v448, 0.0
      %534 = vadd.xlane.f32.xlu0 %v533
      %v535 = vpop.xlane.xlu0 %534
      %v536 = vsel %vm517, %v451, 0.0
      %537 = vadd.xlane.f32.xlu0 %v536
      %v538 = vpop.xlane.xlu0 %537
      %v539 = vsel %vm517, %v453, 0.0
      %540 = vadd.xlane.f32.xlu0 %v539
      %v541 = vpop.xlane.xlu0 %540
      %v542 = vsel %vm517, %v456, 0.0
      %543 = vadd.xlane.f32.xlu0 %v542
      %v544 = vpop.xlane.xlu0 %543
      %v545 = vsel %vm517, %v458, 0.0
      %546 = vadd.xlane.f32.xlu0 %v545
      %v547 = vpop.xlane.xlu0 %546
      %v548 = vsel %vm517, %v461, 0.0
      %549 = vadd.xlane.f32.xlu0 %v548
      %v550 = vpop.xlane.xlu0 %549
      %v551 = vsel %vm517, %v463, 0.0
      %552 = vadd.xlane.f32.xlu0 %v551
      %v553 = vpop.xlane.xlu0 %552
      %v554 = vsel %vm517, %v466, 0.0
      %555 = vadd.xlane.f32.xlu0 %v554
      %v556 = vpop.xlane.xlu0 %555
      %v557 = vsel %vm517, %v468, 0.0
      %558 = vadd.xlane.f32.xlu0 %v557
      %v559 = vpop.xlane.xlu0 %558
      %v560 = vsel %vm517, %v471, 0.0
      %561 = vadd.xlane.f32.xlu0 %v560
      %v562 = vpop.xlane.xlu0 %561
      %v563 = vsel %vm517, %v473, 0.0
      %564 = vadd.xlane.f32.xlu0 %v563
      %v565 = vpop.xlane.xlu0 %564
      %v566 = vsel %vm517, %v476, 0.0
      %567 = vadd.xlane.f32.xlu0 %v566
      %v568 = vpop.xlane.xlu0 %567
      %v569 = vsel %vm517, %v478, 0.0
      %570 = vadd.xlane.f32.xlu0 %v569
      %v571 = vpop.xlane.xlu0 %570
      %v572 = vsel %vm517, %v481, 0.0
      %573 = vadd.xlane.f32.xlu0 %v572
      %v574 = vpop.xlane.xlu0 %573
      %v575 = vsel %vm517, %v483, 0.0
      %576 = vadd.xlane.f32.xlu0 %v575
      %v577 = vpop.xlane.xlu0 %576
      %v578 = vsel %vm517, %v486, 0.0
      %579 = vadd.xlane.f32.xlu0 %v578
      %v580 = vpop.xlane.xlu0 %579
      %v581 = vsel %vm517, %v488, 0.0
      %582 = vadd.xlane.f32.xlu0 %v581
      %v583 = vpop.xlane.xlu0 %582
      %v584 = vsel %vm517, %v491, 0.0
      %585 = vadd.xlane.f32.xlu0 %v584
      %v586 = vpop.xlane.xlu0 %585
      %v587 = vsel %vm517, %v493, 0.0
      %588 = vadd.xlane.f32.xlu0 %v587
      %v589 = vpop.xlane.xlu0 %588
      %v590 = vsel %vm517, %v496, 0.0
      %591 = vadd.xlane.f32.xlu0 %v590
      %v592 = vpop.xlane.xlu0 %591
      %v593 = vsel %vm517, %v498, 0.0
      %594 = vadd.xlane.f32.xlu0 %v593
      %v595 = vpop.xlane.xlu0 %594
      %v596 = vsel %vm517, %v501, 0.0
      %597 = vadd.xlane.f32.xlu0 %v596
      %v598 = vpop.xlane.xlu0 %597
      %v599 = vsel %vm517, %v503, 0.0
      %600 = vadd.xlane.f32.xlu0 %v599
      %v601 = vpop.xlane.xlu0 %600
      %v602 = vsel %vm517, %v506, 0.0
      %603 = vadd.xlane.f32.xlu0 %v602
      %v604 = vpop.xlane.xlu0 %603
      %v605 = vsel %vm517, %v508, 0.0
      %606 = vadd.xlane.f32.xlu0 %v605
      %v607 = vpop.xlane.xlu0 %606
      %v608 = vsel %vm517, %v511, 0.0
      %609 = vadd.xlane.f32.xlu0 %v608
      %v610 = vpop.xlane.xlu0 %609
      %v611 = vsel %vm517, %v513, 0.0
      %612 = vadd.xlane.f32.xlu0 %v611
      %v613 = vpop.xlane.xlu0 %612
      %v614 = vrcp.pop 16.0
      %v615 = vmul.f32 16.0, %v614
      %v616 = vsub.f32 1.0, %v615
      %v617 = vmul.f32 %v614, %v616
      %v618 = vadd.f32 %v614, %v617
      %vm619 = vweird.f32 %v614
      %v620 = vsel %vm619, %v614, %v618
      %v621 = vmul.f32 %v520, %v620
      %v622 = vmul.f32 %v523, %v620
      %v623 = vmul.f32 %v526, %v620
      %v624 = vmul.f32 %v529, %v620
      %v625 = vmul.f32 %v532, %v620
      %v626 = vmul.f32 %v535, %v620
      %v627 = vmul.f32 %v538, %v620
      %v628 = vmul.f32 %v541, %v620
      %v629 = vmul.f32 %v544, %v620
      %v630 = vmul.f32 %v547, %v620
      %v631 = vmul.f32 %v550, %v620
      %v632 = vmul.f32 %v553, %v620
      %v633 = vmul.f32 %v556, %v620
      %v634 = vmul.f32 %v559, %v620
      %v635 = vmul.f32 %v562, %v620
      %v636 = vmul.f32 %v565, %v620
      %v637 = vmul.f32 %v568, %v620
      %v638 = vmul.f32 %v571, %v620
      %v639 = vmul.f32 %v574, %v620
      %v640 = vmul.f32 %v577, %v620
      %v641 = vmul.f32 %v580, %v620
      %v642 = vmul.f32 %v583, %v620
      %v643 = vmul.f32 %v586, %v620
      %v644 = vmul.f32 %v589, %v620
      %v645 = vmul.f32 %v592, %v620
      %v646 = vmul.f32 %v595, %v620
      %v647 = vmul.f32 %v598, %v620
      %v648 = vmul.f32 %v601, %v620
      %v649 = vmul.f32 %v604, %v620
      %v650 = vmul.f32 %v607, %v620
      %v651 = vmul.f32 %v610, %v620
      %v652 = vmul.f32 %v613, %v620
      %v653 = vsub.f32 %v436, %v621
      %v654 = vsub.f32 %v438, %v622
      %v655 = vsub.f32 %v441, %v623
      %v656 = vsub.f32 %v443, %v624
      %v657 = vsub.f32 %v446, %v625
      %v658 = vsub.f32 %v448, %v626
      %v659 = vsub.f32 %v451, %v627
      %v660 = vsub.f32 %v453, %v628
      %v661 = vsub.f32 %v456, %v629
      %v662 = vsub.f32 %v458, %v630
      %v663 = vsub.f32 %v461, %v631
      %v664 = vsub.f32 %v463, %v632
      %v665 = vsub.f32 %v466, %v633
      %v666 = vsub.f32 %v468, %v634
      %v667 = vsub.f32 %v471, %v635
      %v668 = vsub.f32 %v473, %v636
      %v669 = vsub.f32 %v476, %v637
      %v670 = vsub.f32 %v478, %v638
      %v671 = vsub.f32 %v481, %v639
      %v672 = vsub.f32 %v483, %v640
      %v673 = vsub.f32 %v486, %v641
      %v674 = vsub.f32 %v488, %v642
      %v675 = vsub.f32 %v491, %v643
      %v676 = vsub.f32 %v493, %v644
      %v677 = vsub.f32 %v496, %v645
      %v678 = vsub.f32 %v498, %v646
      %v679 = vsub.f32 %v501, %v647
      %v680 = vsub.f32 %v503, %v648
      %v681 = vsub.f32 %v506, %v649
      %v682 = vsub.f32 %v508, %v650
      %v683 = vsub.f32 %v511, %v651
      %v684 = vsub.f32 %v513, %v652
      %v685 = vmul.f32 %v653, %v653
      %v686 = vmul.f32 %v654, %v654
      %v687 = vmul.f32 %v655, %v655
      %v688 = vmul.f32 %v656, %v656
      %v689 = vmul.f32 %v657, %v657
      %v690 = vmul.f32 %v658, %v658
      %v691 = vmul.f32 %v659, %v659
      %v692 = vmul.f32 %v660, %v660
      %v693 = vmul.f32 %v661, %v661
      %v694 = vmul.f32 %v662, %v662
      %v695 = vmul.f32 %v663, %v663
      %v696 = vmul.f32 %v664, %v664
      %v697 = vmul.f32 %v665, %v665
      %v698 = vmul.f32 %v666, %v666
      %v699 = vmul.f32 %v667, %v667
      %v700 = vmul.f32 %v668, %v668
      %v701 = vmul.f32 %v669, %v669
      %v702 = vmul.f32 %v670, %v670
      %v703 = vmul.f32 %v671, %v671
      %v704 = vmul.f32 %v672, %v672
      %v705 = vmul.f32 %v673, %v673
      %v706 = vmul.f32 %v674, %v674
      %v707 = vmul.f32 %v675, %v675
      %v708 = vmul.f32 %v676, %v676
      %v709 = vmul.f32 %v677, %v677
      %v710 = vmul.f32 %v678, %v678
      %v711 = vmul.f32 %v679, %v679
      %v712 = vmul.f32 %v680, %v680
      %v713 = vmul.f32 %v681, %v681
      %v714 = vmul.f32 %v682, %v682
      %v715 = vmul.f32 %v683, %v683
      %v716 = vmul.f32 %v684, %v684
      %v717 = vsel %vm517, %v685, 0.0
      %718 = vadd.xlane.f32.xlu0 %v717
      %v719 = vpop.xlane.xlu0 %718
      %v720 = vsel %vm517, %v686, 0.0
      %721 = vadd.xlane.f32.xlu0 %v720
      %v722 = vpop.xlane.xlu0 %721
      %v723 = vsel %vm517, %v687, 0.0
      %724 = vadd.xlane.f32.xlu0 %v723
      %v725 = vpop.xlane.xlu0 %724
      %v726 = vsel %vm517, %v688, 0.0
      %727 = vadd.xlane.f32.xlu0 %v726
      %v728 = vpop.xlane.xlu0 %727
      %v729 = vsel %vm517, %v689, 0.0
      %730 = vadd.xlane.f32.xlu0 %v729
      %v731 = vpop.xlane.xlu0 %730
      %v732 = vsel %vm517, %v690, 0.0
      %733 = vadd.xlane.f32.xlu0 %v732
      %v734 = vpop.xlane.xlu0 %733
      %v735 = vsel %vm517, %v691, 0.0
      %736 = vadd.xlane.f32.xlu0 %v735
      %v737 = vpop.xlane.xlu0 %736
      %v738 = vsel %vm517, %v692, 0.0
      %739 = vadd.xlane.f32.xlu0 %v738
      %v740 = vpop.xlane.xlu0 %739
      %v741 = vsel %vm517, %v693, 0.0
      %742 = vadd.xlane.f32.xlu0 %v741
      %v743 = vpop.xlane.xlu0 %742
      %v744 = vsel %vm517, %v694, 0.0
      %745 = vadd.xlane.f32.xlu0 %v744
      %v746 = vpop.xlane.xlu0 %745
      %v747 = vsel %vm517, %v695, 0.0
      %748 = vadd.xlane.f32.xlu0 %v747
      %v749 = vpop.xlane.xlu0 %748
      %v750 = vsel %vm517, %v696, 0.0
      %751 = vadd.xlane.f32.xlu0 %v750
      %v752 = vpop.xlane.xlu0 %751
      %v753 = vsel %vm517, %v697, 0.0
      %754 = vadd.xlane.f32.xlu0 %v753
      %v755 = vpop.xlane.xlu0 %754
      %v756 = vsel %vm517, %v698, 0.0
      %757 = vadd.xlane.f32.xlu0 %v756
      %v758 = vpop.xlane.xlu0 %757
      %v759 = vsel %vm517, %v699, 0.0
      %760 = vadd.xlane.f32.xlu0 %v759
      %v761 = vpop.xlane.xlu0 %760
      %v762 = vsel %vm517, %v700, 0.0
      %763 = vadd.xlane.f32.xlu0 %v762
      %v764 = vpop.xlane.xlu0 %763
      %v765 = vsel %vm517, %v701, 0.0
      %766 = vadd.xlane.f32.xlu0 %v765
      %v767 = vpop.xlane.xlu0 %766
      %v768 = vsel %vm517, %v702, 0.0
      %769 = vadd.xlane.f32.xlu0 %v768
      %v770 = vpop.xlane.xlu0 %769
      %v771 = vsel %vm517, %v703, 0.0
      %772 = vadd.xlane.f32.xlu0 %v771
      %v773 = vpop.xlane.xlu0 %772
      %v774 = vsel %vm517, %v704, 0.0
      %775 = vadd.xlane.f32.xlu0 %v774
      %v776 = vpop.xlane.xlu0 %775
      %v777 = vsel %vm517, %v705, 0.0
      %778 = vadd.xlane.f32.xlu0 %v777
      %v779 = vpop.xlane.xlu0 %778
      %v780 = vsel %vm517, %v706, 0.0
      %781 = vadd.xlane.f32.xlu0 %v780
      %v782 = vpop.xlane.xlu0 %781
      %v783 = vsel %vm517, %v707, 0.0
      %784 = vadd.xlane.f32.xlu0 %v783
      %v785 = vpop.xlane.xlu0 %784
      %v786 = vsel %vm517, %v708, 0.0
      %787 = vadd.xlane.f32.xlu0 %v786
      %v788 = vpop.xlane.xlu0 %787
      %v789 = vsel %vm517, %v709, 0.0
      %790 = vadd.xlane.f32.xlu0 %v789
      %v791 = vpop.xlane.xlu0 %790
      %v792 = vsel %vm517, %v710, 0.0
      %793 = vadd.xlane.f32.xlu0 %v792
      %v794 = vpop.xlane.xlu0 %793
      %v795 = vsel %vm517, %v711, 0.0
      %796 = vadd.xlane.f32.xlu0 %v795
      %v797 = vpop.xlane.xlu0 %796
      %v798 = vsel %vm517, %v712, 0.0
      %799 = vadd.xlane.f32.xlu0 %v798
      %v800 = vpop.xlane.xlu0 %799
      %v801 = vsel %vm517, %v713, 0.0
      %802 = vadd.xlane.f32.xlu0 %v801
      %v803 = vpop.xlane.xlu0 %802
      %v804 = vsel %vm517, %v714, 0.0
      %805 = vadd.xlane.f32.xlu0 %v804
      %v806 = vpop.xlane.xlu0 %805
      %v807 = vsel %vm517, %v715, 0.0
      %808 = vadd.xlane.f32.xlu0 %v807
      %v809 = vpop.xlane.xlu0 %808
      %v810 = vsel %vm517, %v716, 0.0
      %811 = vadd.xlane.f32.xlu0 %v810
      %v812 = vpop.xlane.xlu0 %811
      %v813 = vmul.f32 %v719, %v620
      %v814 = vmul.f32 %v722, %v620
      %v815 = vmul.f32 %v725, %v620
      %v816 = vmul.f32 %v728, %v620
      %v817 = vmul.f32 %v731, %v620
      %v818 = vmul.f32 %v734, %v620
      %v819 = vmul.f32 %v737, %v620
      %v820 = vmul.f32 %v740, %v620
      %v821 = vmul.f32 %v743, %v620
      %v822 = vmul.f32 %v746, %v620
      %v823 = vmul.f32 %v749, %v620
      %v824 = vmul.f32 %v752, %v620
      %v825 = vmul.f32 %v755, %v620
      %v826 = vmul.f32 %v758, %v620
      %v827 = vmul.f32 %v761, %v620
      %v828 = vmul.f32 %v764, %v620
      %v829 = vmul.f32 %v767, %v620
      %v830 = vmul.f32 %v770, %v620
      %v831 = vmul.f32 %v773, %v620
      %v832 = vmul.f32 %v776, %v620
      %v833 = vmul.f32 %v779, %v620
      %v834 = vmul.f32 %v782, %v620
      %v835 = vmul.f32 %v785, %v620
      %v836 = vmul.f32 %v788, %v620
      %v837 = vmul.f32 %v791, %v620
      %v838 = vmul.f32 %v794, %v620
      %v839 = vmul.f32 %v797, %v620
      %v840 = vmul.f32 %v800, %v620
      %v841 = vmul.f32 %v803, %v620
      %v842 = vmul.f32 %v806, %v620
      %v843 = vmul.f32 %v809, %v620
      %v844 = vmul.f32 %v812, %v620
      %v845 = vadd.f32 %v813, 1e-05
      %v846 = vadd.f32 %v814, 1e-05
      %v847 = vadd.f32 %v815, 1e-05
      %v848 = vadd.f32 %v816, 1e-05
      %v849 = vadd.f32 %v817, 1e-05
      %v850 = vadd.f32 %v818, 1e-05
      %v851 = vadd.f32 %v819, 1e-05
      %v852 = vadd.f32 %v820, 1e-05
      %v853 = vadd.f32 %v821, 1e-05
      %v854 = vadd.f32 %v822, 1e-05
      %v855 = vadd.f32 %v823, 1e-05
      %v856 = vadd.f32 %v824, 1e-05
      %v857 = vadd.f32 %v825, 1e-05
      %v858 = vadd.f32 %v826, 1e-05
      %v859 = vadd.f32 %v827, 1e-05
      %v860 = vadd.f32 %v828, 1e-05
      %v861 = vadd.f32 %v829, 1e-05
      %v862 = vadd.f32 %v830, 1e-05
      %v863 = vadd.f32 %v831, 1e-05
      %v864 = vadd.f32 %v832, 1e-05
      %v865 = vadd.f32 %v833, 1e-05
      %v866 = vadd.f32 %v834, 1e-05
      %v867 = vadd.f32 %v835, 1e-05
      %v868 = vadd.f32 %v836, 1e-05
      %v869 = vadd.f32 %v837, 1e-05
      %v870 = vadd.f32 %v838, 1e-05
      %v871 = vadd.f32 %v839, 1e-05
      %v872 = vadd.f32 %v840, 1e-05
      %v873 = vadd.f32 %v841, 1e-05
      %v874 = vadd.f32 %v842, 1e-05
      %v875 = vadd.f32 %v843, 1e-05
      %v876 = vadd.f32 %v844, 1e-05
      %v877 = vrsqrt.pop %v845
      %v878 = vmul.f32 %v877, %v845
      %v879 = vmul.f32 %v878, %v877
      %v880 = vmul.f32 0.5, %v879
      %v881 = vsub.f32 1.5, %v880
      %v882 = vmul.f32 %v877, %v881
      %vm883 = vweird.f32 %v845
      %vm884 = vweird.f32 %v877
      %vm885 = vmor %vm883, %vm884
      %v886 = vsel %vm885, %v877, %v882
      %v887 = vrsqrt.pop %v846
      %v888 = vmul.f32 %v887, %v846
      %v889 = vmul.f32 %v888, %v887
      %v890 = vmul.f32 0.5, %v889
      %v891 = vsub.f32 1.5, %v890
      %v892 = vmul.f32 %v887, %v891
      %vm893 = vweird.f32 %v846
      %vm894 = vweird.f32 %v887
      %vm895 = vmor %vm893, %vm894
      %v896 = vsel %vm895, %v887, %v892
      %v897 = vrsqrt.pop %v847
      %v898 = vmul.f32 %v897, %v847
      %v899 = vmul.f32 %v898, %v897
      %v900 = vmul.f32 0.5, %v899
      %v901 = vsub.f32 1.5, %v900
      %v902 = vmul.f32 %v897, %v901
      %vm903 = vweird.f32 %v847
      %vm904 = vweird.f32 %v897
      %vm905 = vmor %vm903, %vm904
      %v906 = vsel %vm905, %v897, %v902
      %v907 = vrsqrt.pop %v848
      %v908 = vmul.f32 %v907, %v848
      %v909 = vmul.f32 %v908, %v907
      %v910 = vmul.f32 0.5, %v909
      %v911 = vsub.f32 1.5, %v910
      %v912 = vmul.f32 %v907, %v911
      %vm913 = vweird.f32 %v848
      %vm914 = vweird.f32 %v907
      %vm915 = vmor %vm913, %vm914
      %v916 = vsel %vm915, %v907, %v912
      %v917 = vrsqrt.pop %v849
      %v918 = vmul.f32 %v917, %v849
      %v919 = vmul.f32 %v918, %v917
      %v920 = vmul.f32 0.5, %v919
      %v921 = vsub.f32 1.5, %v920
      %v922 = vmul.f32 %v917, %v921
      %vm923 = vweird.f32 %v849
      %vm924 = vweird.f32 %v917
      %vm925 = vmor %vm923, %vm924
      %v926 = vsel %vm925, %v917, %v922
      %v927 = vrsqrt.pop %v850
      %v928 = vmul.f32 %v927, %v850
      %v929 = vmul.f32 %v928, %v927
      %v930 = vmul.f32 0.5, %v929
      %v931 = vsub.f32 1.5, %v930
      %v932 = vmul.f32 %v927, %v931
      %vm933 = vweird.f32 %v850
      %vm934 = vweird.f32 %v927
      %vm935 = vmor %vm933, %vm934
      %v936 = vsel %vm935, %v927, %v932
      %v937 = vrsqrt.pop %v851
      %v938 = vmul.f32 %v937, %v851
      %v939 = vmul.f32 %v938, %v937
      %v940 = vmul.f32 0.5, %v939
      %v941 = vsub.f32 1.5, %v940
      %v942 = vmul.f32 %v937, %v941
      %vm943 = vweird.f32 %v851
      %vm944 = vweird.f32 %v937
      %vm945 = vmor %vm943, %vm944
      %v946 = vsel %vm945, %v937, %v942
      %v947 = vrsqrt.pop %v852
      %v948 = vmul.f32 %v947, %v852
      %v949 = vmul.f32 %v948, %v947
      %v950 = vmul.f32 0.5, %v949
      %v951 = vsub.f32 1.5, %v950
      %v952 = vmul.f32 %v947, %v951
      %vm953 = vweird.f32 %v852
      %vm954 = vweird.f32 %v947
      %vm955 = vmor %vm953, %vm954
      %v956 = vsel %vm955, %v947, %v952
      %v957 = vrsqrt.pop %v853
      %v958 = vmul.f32 %v957, %v853
      %v959 = vmul.f32 %v958, %v957
      %v960 = vmul.f32 0.5, %v959
      %v961 = vsub.f32 1.5, %v960
      %v962 = vmul.f32 %v957, %v961
      %vm963 = vweird.f32 %v853
      %vm964 = vweird.f32 %v957
      %vm965 = vmor %vm963, %vm964
      %v966 = vsel %vm965, %v957, %v962
      %v967 = vrsqrt.pop %v854
      %v968 = vmul.f32 %v967, %v854
      %v969 = vmul.f32 %v968, %v967
      %v970 = vmul.f32 0.5, %v969
      %v971 = vsub.f32 1.5, %v970
      %v972 = vmul.f32 %v967, %v971
      %vm973 = vweird.f32 %v854
      %vm974 = vweird.f32 %v967
      %vm975 = vmor %vm973, %vm974
      %v976 = vsel %vm975, %v967, %v972
      %v977 = vrsqrt.pop %v855
      %v978 = vmul.f32 %v977, %v855
      %v979 = vmul.f32 %v978, %v977
      %v980 = vmul.f32 0.5, %v979
      %v981 = vsub.f32 1.5, %v980
      %v982 = vmul.f32 %v977, %v981
      %vm983 = vweird.f32 %v855
      %vm984 = vweird.f32 %v977
      %vm985 = vmor %vm983, %vm984
      %v986 = vsel %vm985, %v977, %v982
      %v987 = vrsqrt.pop %v856
      %v988 = vmul.f32 %v987, %v856
      %v989 = vmul.f32 %v988, %v987
      %v990 = vmul.f32 0.5, %v989
      %v991 = vsub.f32 1.5, %v990
      %v992 = vmul.f32 %v987, %v991
      %vm993 = vweird.f32 %v856
      %vm994 = vweird.f32 %v987
      %vm995 = vmor %vm993, %vm994
      %v996 = vsel %vm995, %v987, %v992
      %v997 = vrsqrt.pop %v857
      %v998 = vmul.f32 %v997, %v857
      %v999 = vmul.f32 %v998, %v997
      %v1000 = vmul.f32 0.5, %v999
      %v1001 = vsub.f32 1.5, %v1000
      %v1002 = vmul.f32 %v997, %v1001
      %vm1003 = vweird.f32 %v857
      %vm1004 = vweird.f32 %v997
      %vm1005 = vmor %vm1003, %vm1004
      %v1006 = vsel %vm1005, %v997, %v1002
      %v1007 = vrsqrt.pop %v858
      %v1008 = vmul.f32 %v1007, %v858
      %v1009 = vmul.f32 %v1008, %v1007
      %v1010 = vmul.f32 0.5, %v1009
      %v1011 = vsub.f32 1.5, %v1010
      %v1012 = vmul.f32 %v1007, %v1011
      %vm1013 = vweird.f32 %v858
      %vm1014 = vweird.f32 %v1007
      %vm1015 = vmor %vm1013, %vm1014
      %v1016 = vsel %vm1015, %v1007, %v1012
      %v1017 = vrsqrt.pop %v859
      %v1018 = vmul.f32 %v1017, %v859
      %v1019 = vmul.f32 %v1018, %v1017
      %v1020 = vmul.f32 0.5, %v1019
      %v1021 = vsub.f32 1.5, %v1020
      %v1022 = vmul.f32 %v1017, %v1021
      %vm1023 = vweird.f32 %v859
      %vm1024 = vweird.f32 %v1017
      %vm1025 = vmor %vm1023, %vm1024
      %v1026 = vsel %vm1025, %v1017, %v1022
      %v1027 = vrsqrt.pop %v860
      %v1028 = vmul.f32 %v1027, %v860
      %v1029 = vmul.f32 %v1028, %v1027
      %v1030 = vmul.f32 0.5, %v1029
      %v1031 = vsub.f32 1.5, %v1030
      %v1032 = vmul.f32 %v1027, %v1031
      %vm1033 = vweird.f32 %v860
      %vm1034 = vweird.f32 %v1027
      %vm1035 = vmor %vm1033, %vm1034
      %v1036 = vsel %vm1035, %v1027, %v1032
      %v1037 = vrsqrt.pop %v861
      %v1038 = vmul.f32 %v1037, %v861
      %v1039 = vmul.f32 %v1038, %v1037
      %v1040 = vmul.f32 0.5, %v1039
      %v1041 = vsub.f32 1.5, %v1040
      %v1042 = vmul.f32 %v1037, %v1041
      %vm1043 = vweird.f32 %v861
      %vm1044 = vweird.f32 %v1037
      %vm1045 = vmor %vm1043, %vm1044
      %v1046 = vsel %vm1045, %v1037, %v1042
      %v1047 = vrsqrt.pop %v862
      %v1048 = vmul.f32 %v1047, %v862
      %v1049 = vmul.f32 %v1048, %v1047
      %v1050 = vmul.f32 0.5, %v1049
      %v1051 = vsub.f32 1.5, %v1050
      %v1052 = vmul.f32 %v1047, %v1051
      %vm1053 = vweird.f32 %v862
      %vm1054 = vweird.f32 %v1047
      %vm1055 = vmor %vm1053, %vm1054
      %v1056 = vsel %vm1055, %v1047, %v1052
      %v1057 = vrsqrt.pop %v863
      %v1058 = vmul.f32 %v1057, %v863
      %v1059 = vmul.f32 %v1058, %v1057
      %v1060 = vmul.f32 0.5, %v1059
      %v1061 = vsub.f32 1.5, %v1060
      %v1062 = vmul.f32 %v1057, %v1061
      %vm1063 = vweird.f32 %v863
      %vm1064 = vweird.f32 %v1057
      %vm1065 = vmor %vm1063, %vm1064
      %v1066 = vsel %vm1065, %v1057, %v1062
      %v1067 = vrsqrt.pop %v864
      %v1068 = vmul.f32 %v1067, %v864
      %v1069 = vmul.f32 %v1068, %v1067
      %v1070 = vmul.f32 0.5, %v1069
      %v1071 = vsub.f32 1.5, %v1070
      %v1072 = vmul.f32 %v1067, %v1071
      %vm1073 = vweird.f32 %v864
      %vm1074 = vweird.f32 %v1067
      %vm1075 = vmor %vm1073, %vm1074
      %v1076 = vsel %vm1075, %v1067, %v1072
      %v1077 = vrsqrt.pop %v865
      %v1078 = vmul.f32 %v1077, %v865
      %v1079 = vmul.f32 %v1078, %v1077
      %v1080 = vmul.f32 0.5, %v1079
      %v1081 = vsub.f32 1.5, %v1080
      %v1082 = vmul.f32 %v1077, %v1081
      %vm1083 = vweird.f32 %v865
      %vm1084 = vweird.f32 %v1077
      %vm1085 = vmor %vm1083, %vm1084
      %v1086 = vsel %vm1085, %v1077, %v1082
      %v1087 = vrsqrt.pop %v866
      %v1088 = vmul.f32 %v1087, %v866
      %v1089 = vmul.f32 %v1088, %v1087
      %v1090 = vmul.f32 0.5, %v1089
      %v1091 = vsub.f32 1.5, %v1090
      %v1092 = vmul.f32 %v1087, %v1091
      %vm1093 = vweird.f32 %v866
      %vm1094 = vweird.f32 %v1087
      %vm1095 = vmor %vm1093, %vm1094
      %v1096 = vsel %vm1095, %v1087, %v1092
      %v1097 = vrsqrt.pop %v867
      %v1098 = vmul.f32 %v1097, %v867
      %v1099 = vmul.f32 %v1098, %v1097
      %v1100 = vmul.f32 0.5, %v1099
      %v1101 = vsub.f32 1.5, %v1100
      %v1102 = vmul.f32 %v1097, %v1101
      %vm1103 = vweird.f32 %v867
      %vm1104 = vweird.f32 %v1097
      %vm1105 = vmor %vm1103, %vm1104
      %v1106 = vsel %vm1105, %v1097, %v1102
      %v1107 = vrsqrt.pop %v868
      %v1108 = vmul.f32 %v1107, %v868
      %v1109 = vmul.f32 %v1108, %v1107
      %v1110 = vmul.f32 0.5, %v1109
      %v1111 = vsub.f32 1.5, %v1110
      %v1112 = vmul.f32 %v1107, %v1111
      %vm1113 = vweird.f32 %v868
      %vm1114 = vweird.f32 %v1107
      %vm1115 = vmor %vm1113, %vm1114
      %v1116 = vsel %vm1115, %v1107, %v1112
      %v1117 = vrsqrt.pop %v869
      %v1118 = vmul.f32 %v1117, %v869
      %v1119 = vmul.f32 %v1118, %v1117
      %v1120 = vmul.f32 0.5, %v1119
      %v1121 = vsub.f32 1.5, %v1120
      %v1122 = vmul.f32 %v1117, %v1121
      %vm1123 = vweird.f32 %v869
      %vm1124 = vweird.f32 %v1117
      %vm1125 = vmor %vm1123, %vm1124
      %v1126 = vsel %vm1125, %v1117, %v1122
      %v1127 = vrsqrt.pop %v870
      %v1128 = vmul.f32 %v1127, %v870
      %v1129 = vmul.f32 %v1128, %v1127
      %v1130 = vmul.f32 0.5, %v1129
      %v1131 = vsub.f32 1.5, %v1130
      %v1132 = vmul.f32 %v1127, %v1131
      %vm1133 = vweird.f32 %v870
      %vm1134 = vweird.f32 %v1127
      %vm1135 = vmor %vm1133, %vm1134
      %v1136 = vsel %vm1135, %v1127, %v1132
      %v1137 = vrsqrt.pop %v871
      %v1138 = vmul.f32 %v1137, %v871
      %v1139 = vmul.f32 %v1138, %v1137
      %v1140 = vmul.f32 0.5, %v1139
      %v1141 = vsub.f32 1.5, %v1140
      %v1142 = vmul.f32 %v1137, %v1141
      %vm1143 = vweird.f32 %v871
      %vm1144 = vweird.f32 %v1137
      %vm1145 = vmor %vm1143, %vm1144
      %v1146 = vsel %vm1145, %v1137, %v1142
      %v1147 = vrsqrt.pop %v872
      %v1148 = vmul.f32 %v1147, %v872
      %v1149 = vmul.f32 %v1148, %v1147
      %v1150 = vmul.f32 0.5, %v1149
      %v1151 = vsub.f32 1.5, %v1150
      %v1152 = vmul.f32 %v1147, %v1151
      %vm1153 = vweird.f32 %v872
      %vm1154 = vweird.f32 %v1147
      %vm1155 = vmor %vm1153, %vm1154
      %v1156 = vsel %vm1155, %v1147, %v1152
      %v1157 = vrsqrt.pop %v873
      %v1158 = vmul.f32 %v1157, %v873
      %v1159 = vmul.f32 %v1158, %v1157
      %v1160 = vmul.f32 0.5, %v1159
      %v1161 = vsub.f32 1.5, %v1160
      %v1162 = vmul.f32 %v1157, %v1161
      %vm1163 = vweird.f32 %v873
      %vm1164 = vweird.f32 %v1157
      %vm1165 = vmor %vm1163, %vm1164
      %v1166 = vsel %vm1165, %v1157, %v1162
      %v1167 = vrsqrt.pop %v874
      %v1168 = vmul.f32 %v1167, %v874
      %v1169 = vmul.f32 %v1168, %v1167
      %v1170 = vmul.f32 0.5, %v1169
      %v1171 = vsub.f32 1.5, %v1170
      %v1172 = vmul.f32 %v1167, %v1171
      %vm1173 = vweird.f32 %v874
      %vm1174 = vweird.f32 %v1167
      %vm1175 = vmor %vm1173, %vm1174
      %v1176 = vsel %vm1175, %v1167, %v1172
      %v1177 = vrsqrt.pop %v875
      %v1178 = vmul.f32 %v1177, %v875
      %v1179 = vmul.f32 %v1178, %v1177
      %v1180 = vmul.f32 0.5, %v1179
      %v1181 = vsub.f32 1.5, %v1180
      %v1182 = vmul.f32 %v1177, %v1181
      %vm1183 = vweird.f32 %v875
      %vm1184 = vweird.f32 %v1177
      %vm1185 = vmor %vm1183, %vm1184
      %v1186 = vsel %vm1185, %v1177, %v1182
      %v1187 = vrsqrt.pop %v876
      %v1188 = vmul.f32 %v1187, %v876
      %v1189 = vmul.f32 %v1188, %v1187
      %v1190 = vmul.f32 0.5, %v1189
      %v1191 = vsub.f32 1.5, %v1190
      %v1192 = vmul.f32 %v1187, %v1191
      %vm1193 = vweird.f32 %v876
      %vm1194 = vweird.f32 %v1187
      %vm1195 = vmor %vm1193, %vm1194
      %v1196 = vsel %vm1195, %v1187, %v1192
      %v1197 = vmul.f32 %v653, %v886
      %v1198 = vmul.f32 %v654, %v896
      %v1199 = vmul.f32 %v655, %v906
      %v1200 = vmul.f32 %v656, %v916
      %v1201 = vmul.f32 %v657, %v926
      %v1202 = vmul.f32 %v658, %v936
      %v1203 = vmul.f32 %v659, %v946
      %v1204 = vmul.f32 %v660, %v956
      %v1205 = vmul.f32 %v661, %v966
      %v1206 = vmul.f32 %v662, %v976
      %v1207 = vmul.f32 %v663, %v986
      %v1208 = vmul.f32 %v664, %v996
      %v1209 = vmul.f32 %v665, %v1006
      %v1210 = vmul.f32 %v666, %v1016
      %v1211 = vmul.f32 %v667, %v1026
      %v1212 = vmul.f32 %v668, %v1036
      %v1213 = vmul.f32 %v669, %v1046
      %v1214 = vmul.f32 %v670, %v1056
      %v1215 = vmul.f32 %v671, %v1066
      %v1216 = vmul.f32 %v672, %v1076
      %v1217 = vmul.f32 %v673, %v1086
      %v1218 = vmul.f32 %v674, %v1096
      %v1219 = vmul.f32 %v675, %v1106
      %v1220 = vmul.f32 %v676, %v1116
      %v1221 = vmul.f32 %v677, %v1126
      %v1222 = vmul.f32 %v678, %v1136
      %v1223 = vmul.f32 %v679, %v1146
      %v1224 = vmul.f32 %v680, %v1156
      %v1225 = vmul.f32 %v681, %v1166
      %v1226 = vmul.f32 %v682, %v1176
      %v1227 = vmul.f32 %v683, %v1186
      %v1228 = vmul.f32 %v684, %v1196
      %v1230 = vperm.slane %v515, 0
      %v1232 = vmul.f32 %v1197, %v1230
      %v1233 = vmul.f32 %v1198, %v1230
      %v1234 = vmul.f32 %v1199, %v1230
      %v1235 = vmul.f32 %v1200, %v1230
      %v1236 = vmul.f32 %v1201, %v1230
      %v1237 = vmul.f32 %v1202, %v1230
      %v1238 = vmul.f32 %v1203, %v1230
      %v1239 = vmul.f32 %v1204, %v1230
      %v1240 = vmul.f32 %v1205, %v1230
      %v1241 = vmul.f32 %v1206, %v1230
      %v1242 = vmul.f32 %v1207, %v1230
      %v1243 = vmul.f32 %v1208, %v1230
      %v1244 = vmul.f32 %v1209, %v1230
      %v1245 = vmul.f32 %v1210, %v1230
      %v1246 = vmul.f32 %v1211, %v1230
      %v1247 = vmul.f32 %v1212, %v1230
      %v1248 = vmul.f32 %v1213, %v1230
      %v1249 = vmul.f32 %v1214, %v1230
      %v1250 = vmul.f32 %v1215, %v1230
      %v1251 = vmul.f32 %v1216, %v1230
      %v1252 = vmul.f32 %v1217, %v1230
      %v1253 = vmul.f32 %v1218, %v1230
      %v1254 = vmul.f32 %v1219, %v1230
      %v1255 = vmul.f32 %v1220, %v1230
      %v1256 = vmul.f32 %v1221, %v1230
      %v1257 = vmul.f32 %v1222, %v1230
      %v1258 = vmul.f32 %v1223, %v1230
      %v1259 = vmul.f32 %v1224, %v1230
      %v1260 = vmul.f32 %v1225, %v1230
      %v1261 = vmul.f32 %v1226, %v1230
      %v1262 = vmul.f32 %v1227, %v1230
      %v1263 = vmul.f32 %v1228, %v1230
      %v1265 = vperm.slane %v516, 0
      %v1267 = vadd.f32 %v1232, %v1265
      %v1268 = vadd.f32 %v1233, %v1265
      %v1269 = vadd.f32 %v1234, %v1265
      %v1270 = vadd.f32 %v1235, %v1265
      %v1271 = vadd.f32 %v1236, %v1265
      %v1272 = vadd.f32 %v1237, %v1265
      %v1273 = vadd.f32 %v1238, %v1265
      %v1274 = vadd.f32 %v1239, %v1265
      %v1275 = vadd.f32 %v1240, %v1265
      %v1276 = vadd.f32 %v1241, %v1265
      %v1277 = vadd.f32 %v1242, %v1265
      %v1278 = vadd.f32 %v1243, %v1265
      %v1279 = vadd.f32 %v1244, %v1265
      %v1280 = vadd.f32 %v1245, %v1265
      %v1281 = vadd.f32 %v1246, %v1265
      %v1282 = vadd.f32 %v1247, %v1265
      %v1283 = vadd.f32 %v1248, %v1265
      %v1284 = vadd.f32 %v1249, %v1265
      %v1285 = vadd.f32 %v1250, %v1265
      %v1286 = vadd.f32 %v1251, %v1265
      %v1287 = vadd.f32 %v1252, %v1265
      %v1288 = vadd.f32 %v1253, %v1265
      %v1289 = vadd.f32 %v1254, %v1265
      %v1290 = vadd.f32 %v1255, %v1265
      %v1291 = vadd.f32 %v1256, %v1265
      %v1292 = vadd.f32 %v1257, %v1265
      %v1293 = vadd.f32 %v1258, %v1265
      %v1294 = vadd.f32 %v1259, %v1265
      %v1295 = vadd.f32 %v1260, %v1265
      %v1296 = vadd.f32 %v1261, %v1265
      %v1297 = vadd.f32 %v1262, %v1265
      %v1298 = vadd.f32 %v1263, %v1265
      %1299 = vst.msk [vmem:[%s226] sm:$0xff] %vm517, %v1267
      %1300 = vst.msk [vmem:[%s226 + $0x8] sm:$0xff] %vm517, %v1268
      %1301 = vst.msk [vmem:[%s226 + $0x10] sm:$0xff] %vm517, %v1269
      %1302 = vst.msk [vmem:[%s226 + $0x18] sm:$0xff] %vm517, %v1270
      %1303 = vst.msk [vmem:[%s226 + $0x20] sm:$0xff] %vm517, %v1271
      %1304 = vst.msk [vmem:[%s226 + $0x28] sm:$0xff] %vm517, %v1272
      %1305 = vst.msk [vmem:[%s226 + $0x30] sm:$0xff] %vm517, %v1273
      %1306 = vst.msk [vmem:[%s226 + $0x38] sm:$0xff] %vm517, %v1274
      %1307 = vst.msk [vmem:[%s226 + $0x40] sm:$0xff] %vm517, %v1275
      %1308 = vst.msk [vmem:[%s226 + $0x48] sm:$0xff] %vm517, %v1276
      %1309 = vst.msk [vmem:[%s226 + $0x50] sm:$0xff] %vm517, %v1277
      %1310 = vst.msk [vmem:[%s226 + $0x58] sm:$0xff] %vm517, %v1278
      %1311 = vst.msk [vmem:[%s226 + $0x60] sm:$0xff] %vm517, %v1279
      %1312 = vst.msk [vmem:[%s226 + $0x68] sm:$0xff] %vm517, %v1280
      %1313 = vst.msk [vmem:[%s226 + $0x70] sm:$0xff] %vm517, %v1281
      %1314 = vst.msk [vmem:[%s226 + $0x78] sm:$0xff] %vm517, %v1282
      %1315 = vst.msk [vmem:[%s226 + $0x80] sm:$0xff] %vm517, %v1283
      %1316 = vst.msk [vmem:[%s226 + $0x88] sm:$0xff] %vm517, %v1284
      %1317 = vst.msk [vmem:[%s226 + $0x90] sm:$0xff] %vm517, %v1285
      %1318 = vst.msk [vmem:[%s226 + $0x98] sm:$0xff] %vm517, %v1286
      %1319 = vst.msk [vmem:[%s226 + $0xa0] sm:$0xff] %vm517, %v1287
      %1320 = vst.msk [vmem:[%s226 + $0xa8] sm:$0xff] %vm517, %v1288
      %1321 = vst.msk [vmem:[%s226 + $0xb0] sm:$0xff] %vm517, %v1289
      %1322 = vst.msk [vmem:[%s226 + $0xb8] sm:$0xff] %vm517, %v1290
      %1323 = vst.msk [vmem:[%s226 + $0xc0] sm:$0xff] %vm517, %v1291
      %1324 = vst.msk [vmem:[%s226 + $0xc8] sm:$0xff] %vm517, %v1292
      %1325 = vst.msk [vmem:[%s226 + $0xd0] sm:$0xff] %vm517, %v1293
      %1326 = vst.msk [vmem:[%s226 + $0xd8] sm:$0xff] %vm517, %v1294
      %1327 = vst.msk [vmem:[%s226 + $0xe0] sm:$0xff] %vm517, %v1295
      %1328 = vst.msk [vmem:[%s226 + $0xe8] sm:$0xff] %vm517, %v1296
      %1329 = vst.msk [vmem:[%s226 + $0xf0] sm:$0xff] %vm517, %v1297
      %1330 = vst.msk [vmem:[%s226 + $0xf8] sm:$0xff] %vm517, %v1298
      %s1331 = smul.u32 32, %s16
      %p1332 = scmp.lt.s32.totalorder %s1331, 127
      %s1333 = scalar_select %p1332, %s1331, 127
      %s1334 = smul.addr %s1333, 8
      %s1335 = scalar_lea.vmem %s5, %s1334
      // Predicated region
      $region41: #{tpu_custom_call.1} parent=39 // pred_check
        %p1336 = pneg %p144
      $region42: #{tpu_custom_call.1} parent=39 // pred_check_branch
        %1338 = sbr.rel (%p1336) target = $region44
      $region43: #{tpu_custom_call.1} parent=39 // pred_region
        %s1339 = smul.u32 32, %s16
      $region44: #{tpu_custom_call.1} parent=39 // pred_fallthru
        _
    $region40: #{tpu_custom_call.1} parent=5 // pred_fallthru
      _
    %p1340 = scmp.le.s32.totalorder 2, %s11
    // Predicated region
    $region45: #{tpu_custom_call.1} parent=5 // pred_check
      %p1341 = pneg %p1340
    $region46: #{tpu_custom_call.1} parent=5 // pred_check_branch
      %1343 = sbr.rel (%p1341) target = $region48
    $region47: #{tpu_custom_call.1} parent=5 // pred_region
      %s1344 = ssub.s32 %s11, 2
      // Predicated region
      $region49: #{tpu_custom_call.1} parent=47 // pred_check
        %p1345 = pneg %p150
      $region50: #{tpu_custom_call.1} parent=47 // pred_check_branch
        %1347 = sbr.rel (%p1345) target = $region52
      $region51: #{tpu_custom_call.1} parent=47 // pred_region
        %s1348 = smul.u32 32, %s17
        %p1349 = scmp.lt.s32.totalorder %s1348, 127
        %s1350 = scalar_select %p1349, %s1348, 127
        %s1351 = smul.addr %s1350, 8
        %s1352 = scalar_lea.vmem %s5, %s1351
      $region52: #{tpu_custom_call.1} parent=47 // pred_fallthru
        _
    $region48: #{tpu_custom_call.1} parent=5 // pred_fallthru
      _
  $region6: #{tpu_custom_call.1} parent=0 // loop_footer
    %s15 = sadd.s32 1, %s11
  $region7: #{tpu_custom_call.1} parent=0 // loop_footer_branch
    %10 = sbr.rel target = $region3
  $region8: #{tpu_custom_call.1} parent=0 // loop_exit
    _

</llo_original>
